<compile_context>
chip_gen: v7x
topology: tpu7x:2x2x1
jax: 0.10.0
libtpu: 0.0.40
codegen_flags: <defaults>
</compile_context>

<pallas_src>
import functools

import jax
import jax.numpy as jnp
from jax.experimental import pallas as pl
from jax.experimental.pallas import tpu as pltpu

BN_EPS = 1e-5


def _round_up(x, m):
    return ((x + m - 1) // m) * m


# ----------------------------------------------------------------------------
# Fused Pallas kernel: all GIN layers + BN (+ReLU) + proj + scatter-mean pool
# ----------------------------------------------------------------------------
def fused_gin_kernel(h0_ref, a_ref, mask_ref, eagg_ref,
                     w1_ref, b1_ref, w2_ref, b2_ref, gamma_ref, beta_ref,
                     wp_ref, bp_ref, pmat_ref,
                     out_ref, h_ref, *, inv_n):
    """Grid axis 0 iterates over GIN layers; h_ref (VMEM scratch) carries h."""
    layer = pl.program_id(0)
    num_layers = pl.num_programs(0)

    @pl.when(layer == 0)
    def _init():
        h_ref[...] = h0_ref[...]

    # Neighbor aggregation on the fast bf16 MXU path, f32 accumulation:
    #   aggr = A @ h + eagg_layer   (A counts are small ints -> exact in bf16)
    aggr = jnp.dot(a_ref[...], h_ref[...].astype(jnp.bfloat16),
                   preferred_element_type=jnp.float32)                    # (N, D)
    aggr = aggr + eagg_ref[0].astype(jnp.float32)

    # GIN MLP: Linear(D, 2D) -> ReLU -> Linear(2D, D)   (bf16 weights, f32 acc)
    hm = jnp.dot(aggr.astype(jnp.bfloat16), w1_ref[0],
                 preferred_element_type=jnp.float32) + b1_ref[0]          # (N, 2D)
    hm = jnp.maximum(hm, 0.0)
    h = jnp.dot(hm.astype(jnp.bfloat16), w2_ref[0],
                preferred_element_type=jnp.float32) + b2_ref[0]           # (N, D)

    # Zero out padded rows so BatchNorm stats only see real nodes; inv_n is
    # 1/true_node_count.  Single-pass (E[h^2]-mean^2) biased variance, f32.
    h = h * mask_ref[...]
    mean = jnp.sum(h, axis=0, keepdims=True) * inv_n
    mean_sq = jnp.sum(h * h, axis=0, keepdims=True) * inv_n
    var = mean_sq - mean * mean
    hn = (h - mean) * jax.lax.rsqrt(var + BN_EPS) * gamma_ref[0] + beta_ref[0]

    is_last = layer == num_layers - 1

    @pl.when(jnp.logical_not(is_last))
    def _not_last():
        # ReLU on every layer except the last (dropout p=0.0 == identity).
        h_ref[...] = jnp.maximum(hn, 0.0)

    @pl.when(is_last)
    def _finalize():
        # atom_embedding = proj(h); frag_pred = scatter_mean(atom_embedding, map)
        atom = jnp.dot(hn.astype(jnp.bfloat16), wp_ref[...],
                       preferred_element_type=jnp.float32) + bp_ref[...]  # (N, D)
        out_ref[...] = jnp.dot(pmat_ref[...], atom,
                               preferred_element_type=jnp.float32)        # (G, D)


def run_fused_gin(h0, adj_bf16, mask, eagg, w1s, b1s, w2s, b2s, gms, bts,
                  proj_w, proj_b, pmat, *, true_n):
    N, D = h0.shape
    L = eagg.shape[0]
    G = pmat.shape[0]
    H = w1s.shape[-1]

    const = lambda l: (0, 0)            # operands resident across the layer axis
    per_layer = lambda l: (l, 0, 0)     # stacked per-layer operands

    in_specs = [
        pl.BlockSpec((N, D), const, pipeline_mode=pl.Buffered(1)),    # h0
        pl.BlockSpec((N, N), const, pipeline_mode=pl.Buffered(1)),    # adjacency (bf16)
        pl.BlockSpec((N, 1), const, pipeline_mode=pl.Buffered(1)),    # row mask
        pl.BlockSpec((1, N, D), per_layer),                           # eagg (bf16)
        pl.BlockSpec((1, D, H), per_layer),                           # w1 (bf16)
        pl.BlockSpec((1, 1, H), per_layer),                           # b1
        pl.BlockSpec((1, H, D), per_layer),                           # w2 (bf16)
        pl.BlockSpec((1, 1, D), per_layer),                           # b2
        pl.BlockSpec((1, 1, D), per_layer),                           # gamma
        pl.BlockSpec((1, 1, D), per_layer),                           # beta
        pl.BlockSpec((D, D), const, pipeline_mode=pl.Buffered(1)),    # proj_w (bf16)
        pl.BlockSpec((1, D), const, pipeline_mode=pl.Buffered(1)),    # proj_b
        pl.BlockSpec((G, N), const, pipeline_mode=pl.Buffered(1)),    # pooling matrix
    ]

    args = (h0, adj_bf16, mask, eagg, w1s, b1s, w2s, b2s, gms, bts,
            proj_w, proj_b, pmat)

    # VMEM budget from what is actually resident per grid step:
    #   single-buffered constants + 2x (double-buffered) per-layer slices
    #   + h scratch + output (x2) + activation temporaries; 3x headroom,
    #   clamped to 85% of this generation's physical VMEM (v7x = 64 MiB).
    bsz = lambda a: int(a.size) * jnp.dtype(a.dtype).itemsize
    const_bytes = sum(bsz(a) for a in (h0, adj_bf16, mask, proj_w, proj_b, pmat))
    per_layer_bytes = sum(bsz(a) // L for a in (eagg, w1s, b1s, w2s, b2s, gms, bts))
    temp_bytes = N * (H + 3 * D) * 4
    est = (const_bytes + 2 * per_layer_bytes + N * D * 4
           + 2 * G * D * 4 + temp_bytes)
    try:
        vmem_cap = int(pltpu.get_tpu_info().vmem_capacity_bytes)
    except Exception:
        vmem_cap = 64 * 2 ** 20
    vmem_limit = int(min(0.85 * vmem_cap, max(32 * 2 ** 20, 3 * est)))

    kern = functools.partial(fused_gin_kernel, inv_n=1.0 / float(true_n))
    return pl.pallas_call(
        kern,
        out_shape=jax.ShapeDtypeStruct((G, D), jnp.float32),
        grid_spec=pltpu.PrefetchScalarGridSpec(
            num_scalar_prefetch=0,
            grid=(L,),
            in_specs=in_specs,
            out_specs=pl.BlockSpec((G, D), const),
            scratch_shapes=[pltpu.VMEM((N, D), jnp.float32)],   # h carried across layers
        ),
        compiler_params=pltpu.CompilerParams(
            dimension_semantics=("arbitrary",),       # layer axis is sequential
            vmem_limit_bytes=vmem_limit,
        ),
    )(*args)


# ----------------------------------------------------------------------------
# Parameter init (deterministic, synthetic — mimics the torch shapes)
# ----------------------------------------------------------------------------
def _xavier(key, shape):
    fan_in, fan_out = shape[0], shape[1]
    lim = (6.0 / (fan_in + fan_out)) ** 0.5
    return jax.random.uniform(key, shape, jnp.float32, -lim, lim)


def init_params(key, emb_dim, num_layers):
    keys = iter(jax.random.split(key, 8 + 8 * num_layers))
    params = {
        "x_emb1": _xavier(next(keys), (120, emb_dim)),   # atom embedding 1
        "x_emb2": _xavier(next(keys), (3, emb_dim)),     # atom embedding 2
        "proj_w": _xavier(next(keys), (emb_dim, emb_dim)),
        "proj_b": jax.random.uniform(next(keys), (1, emb_dim), jnp.float32, -0.05, 0.05),
        "layers": [],
    }
    for _ in range(num_layers):
        layer = {
            "e_emb1": _xavier(next(keys), (5, emb_dim)),
            "e_emb2": _xavier(next(keys), (3, emb_dim)),
            "w1": _xavier(next(keys), (emb_dim, 2 * emb_dim)),
            "b1": jax.random.uniform(next(keys), (1, 2 * emb_dim), jnp.float32, -0.05, 0.05),
            "w2": _xavier(next(keys), (2 * emb_dim, emb_dim)),
            "b2": jax.random.uniform(next(keys), (1, emb_dim), jnp.float32, -0.05, 0.05),
            "gamma": jnp.ones((1, emb_dim), jnp.float32),
            "beta": jnp.zeros((1, emb_dim), jnp.float32),
        }
        params["layers"].append(layer)
    return params


# ----------------------------------------------------------------------------
# Full forward (cheap one-time glue in JAX, hot path in one Pallas kernel)
# ----------------------------------------------------------------------------
def mol_embedding_forward(params, x_feat, edge_index, edge_attr, node_map, num_frags):
    N = x_feat.shape[0]
    D = params["x_emb1"].shape[1]
    H = 2 * D
    layers = params["layers"]
    G = num_frags

    # Lane/sublane-friendly padded sizes.  Padded feature columns are exactly
    # zero through the whole network (zero-padded weights/biases, beta_pad=0),
    # padded node rows are masked out of the BatchNorm statistics.
    N_pad = max(_round_up(N, 8), 8)
    D_pad = max(_round_up(D, 128), 128)
    H_pad = max(_round_up(H, 128), 128)
    G_pad = max(_round_up(G, 8), 8)

    def padw(w, r, c):
        return jnp.zeros((r, c), jnp.float32).at[:w.shape[0], :w.shape[1]].set(w)

    # Node embedding: x_embedding1(x[:,0]) + x_embedding2(x[:,1])
    h0 = params["x_emb1"][x_feat[:, 0]] + params["x_emb2"][x_feat[:, 1]]     # (N, D)
    h0p = padw(h0, N_pad, D_pad)                                             # (Np, Dp)

    # add_self_loops: append (i, i) edges with edge_attr = [4, 0]
    self_idx = jnp.arange(N, dtype=edge_index.dtype)
    src = jnp.concatenate([edge_index[0], self_idx])
    dst = jnp.concatenate([edge_index[1], self_idx])
    ea0 = jnp.concatenate([edge_attr[:, 0], jnp.full((N,), 4, edge_attr.dtype)])
    ea1 = jnp.concatenate([edge_attr[:, 1], jnp.zeros((N,), edge_attr.dtype)])

    # Fused adjacency A[i, j] = #edges j->i (incl. self loops).  Small integer
    # counts are exact in bf16 -> half the VMEM footprint of the largest operand.
    adj = jnp.zeros((N_pad, N_pad), jnp.float32).at[dst, src].add(1.0)
    adj_bf16 = adj.astype(jnp.bfloat16)

    # Per-layer aggregated edge embedding: eagg_l[i] = sum_{e: dst=i} edge_emb_l[e]
    # Streamed per layer -> stored in bf16 to halve the per-layer DMA.
    eagg = jnp.stack([
        jnp.zeros((N_pad, D_pad), jnp.float32).at[dst].add(
            jnp.pad(lp["e_emb1"][ea0] + lp["e_emb2"][ea1], ((0, 0), (0, D_pad - D))))
        for lp in layers
    ]).astype(jnp.bfloat16)                                                  # (L, Np, Dp)

    # Stacked per-layer MLP / BN parameters (weights in bf16, rest f32).
    w1s = jnp.stack([padw(lp["w1"], D_pad, H_pad) for lp in layers]).astype(jnp.bfloat16)
    b1s = jnp.stack([padw(lp["b1"], 1, H_pad) for lp in layers])
    w2s = jnp.stack([padw(lp["w2"], H_pad, D_pad) for lp in layers]).astype(jnp.bfloat16)
    b2s = jnp.stack([padw(lp["b2"], 1, D_pad) for lp in layers])
    gms = jnp.stack([jnp.ones((1, D_pad), jnp.float32).at[:, :D].set(lp["gamma"])
                     for lp in layers])
    bts = jnp.stack([padw(lp["beta"], 1, D_pad) for lp in layers])

    proj_w = padw(params["proj_w"], D_pad, D_pad).astype(jnp.bfloat16)
    proj_b = padw(params["proj_b"], 1, D_pad)

    # Row mask (1.0 for real nodes) used to keep padded rows out of BN stats.
    mask = jnp.zeros((N_pad, 1), jnp.float32).at[:N, :].set(1.0)

    # scatter(..., reduce='mean') by data.map, fused with the proj Linear:
    # pmat[g, i] = 1/count_g if map[i]==g else 0  (empty groups -> 0, like torch_scatter)
    onehot_g = jax.nn.one_hot(node_map, G_pad, dtype=jnp.float32)            # (N, Gp)
    counts = jnp.maximum(jnp.sum(onehot_g, axis=0, keepdims=True), 1.0)      # (1, Gp)
    pmat = jnp.zeros((G_pad, N_pad), jnp.float32).at[:, :N].set((onehot_g / counts).T)

    frag_pred = run_fused_gin(h0p, adj_bf16, mask, eagg, w1s, b1s, w2s, b2s,
                              gms, bts, proj_w, proj_b, pmat, true_n=N)      # (Gp, Dp)
    return frag_pred[:G, :D]


# ----------------------------------------------------------------------------
if __name__ == "__main__":
    emb_dim = 32
    num_layers = 5
    N = 8            # nodes (atoms)
    E = 12           # directed edges (before self-loops)
    G = 3            # fragments (max(data.map)+1)

    key = jax.random.PRNGKey(0)
    k_param, k_x0, k_x1, k_src, k_dst, k_ea0, k_ea1, k_map = jax.random.split(key, 8)

    params = init_params(k_param, emb_dim, num_layers)

    # data.x : (N, 2) int node features (atom type, chirality)
    x_feat = jnp.stack(
        [jax.random.randint(k_x0, (N,), 0, 120),
         jax.random.randint(k_x1, (N,), 0, 3)], axis=1).astype(jnp.int32)
    # data.edge_index : (2, E)
    edge_index = jnp.stack(
        [jax.random.randint(k_src, (E,), 0, N),
         jax.random.randint(k_dst, (E,), 0, N)], axis=0).astype(jnp.int32)
    # data.edge_attr : (E, 2) int (bond type in [0,4), bond direction in [0,3))
    edge_attr = jnp.stack(
        [jax.random.randint(k_ea0, (E,), 0, 4),
         jax.random.randint(k_ea1, (E,), 0, 3)], axis=1).astype(jnp.int32)
    # data.map : (N,) fragment assignment per atom; ensure every fragment is hit
    node_map = jnp.concatenate(
        [jnp.arange(G, dtype=jnp.int32),
         jax.random.randint(k_map, (N - G,), 0, G).astype(jnp.int32)])

    # TODO(synk): frag_pred / tree_pred heads exist in __init__ but are unused
    # in MolEmbedding.forward, so they are intentionally not implemented.
    out = mol_embedding_forward(params, x_feat, edge_index, edge_attr, node_map, G)
    out = jax.block_until_ready(out)
    assert out.shape == (G, emb_dim) and out.dtype == jnp.float32
    print("KERNEL_OK")
</pallas_src>

<mosaic_0001>
module attributes {stable_mosaic.version = 11 : i64} {
  func.func @fused_gin_kernel(%arg0: i32, %arg1: memref<8x128xf32, #tpu.memory_space<vmem>>, %arg2: memref<8x8xbf16, #tpu.memory_space<vmem>>, %arg3: memref<8x1xf32, #tpu.memory_space<vmem>>, %arg4: memref<1x8x128xbf16, #tpu.memory_space<vmem>>, %arg5: memref<1x128x128xbf16, #tpu.memory_space<vmem>>, %arg6: memref<1x1x128xf32, #tpu.memory_space<vmem>>, %arg7: memref<1x128x128xbf16, #tpu.memory_space<vmem>>, %arg8: memref<1x1x128xf32, #tpu.memory_space<vmem>>, %arg9: memref<1x1x128xf32, #tpu.memory_space<vmem>>, %arg10: memref<1x1x128xf32, #tpu.memory_space<vmem>>, %arg11: memref<128x128xbf16, #tpu.memory_space<vmem>>, %arg12: memref<1x128xf32, #tpu.memory_space<vmem>>, %arg13: memref<8x8xf32, #tpu.memory_space<vmem>>, %arg14: memref<8x128xf32, #tpu.memory_space<vmem>>, %arg15: memref<8x128xf32, #tpu.memory_space<vmem>>) attributes {dimension_semantics = [#tpu.dimension_semantics<arbitrary>], iteration_bounds = array<i64: 5>, scalar_prefetch = 0 : i64, scratch_operands = 1 : i64, tpu.core_type = #tpu.core_type<tc>, window_params = [{pipeline_mode = #tpu.pipeline_mode<synchronous>, transform_indices = @transform_0, window_bounds = array<i64: 8, 128>}, {pipeline_mode = #tpu.pipeline_mode<synchronous>, transform_indices = @transform_1, window_bounds = array<i64: 8, 8>}, {pipeline_mode = #tpu.pipeline_mode<synchronous>, transform_indices = @transform_2, window_bounds = array<i64: 8, 1>}, {transform_indices = @transform_3, window_bounds = array<i64: 1, 8, 128>}, {transform_indices = @transform_4, window_bounds = array<i64: 1, 128, 128>}, {transform_indices = @transform_5, window_bounds = array<i64: 1, 1, 128>}, {transform_indices = @transform_6, window_bounds = array<i64: 1, 128, 128>}, {transform_indices = @transform_7, window_bounds = array<i64: 1, 1, 128>}, {transform_indices = @transform_8, window_bounds = array<i64: 1, 1, 128>}, {transform_indices = @transform_9, window_bounds = array<i64: 1, 1, 128>}, {pipeline_mode = #tpu.pipeline_mode<synchronous>, transform_indices = @transform_10, window_bounds = array<i64: 128, 128>}, {pipeline_mode = #tpu.pipeline_mode<synchronous>, transform_indices = @transform_11, window_bounds = array<i64: 1, 128>}, {pipeline_mode = #tpu.pipeline_mode<synchronous>, transform_indices = @transform_12, window_bounds = array<i64: 8, 8>}, {pipeline_mode = #tpu.pipeline_mode<synchronous>, transform_indices = @transform_13, window_bounds = array<i64: 8, 128>}]} {
    %c0_i32 = arith.constant 0 : i32
    %0 = arith.cmpi eq, %arg0, %c0_i32 : i32
    %1 = arith.extui %0 : i1 to i32
    %c0_i32_0 = arith.constant 0 : i32
    %2 = arith.cmpi ne, %1, %c0_i32_0 : i32
    scf.if %2 {
      %c0_37 = arith.constant 0 : index
      %c0_38 = arith.constant 0 : index
      %64 = vector.load %arg1[%c0_37, %c0_38] : memref<8x128xf32, #tpu.memory_space<vmem>>, vector<8x128xf32>
      %c0_39 = arith.constant 0 : index
      %c0_40 = arith.constant 0 : index
      %65 = vector.load %arg15[%c0_39, %c0_40] : memref<8x128xf32, #tpu.memory_space<vmem>>, vector<8x128xf32>
      tpu.vector_store %arg15[%c0_39, %c0_40], %64 {strides = array<i32>} : memref<8x128xf32, #tpu.memory_space<vmem>>, vector<8x128xf32>,
    } else {
    }
    %c0 = arith.constant 0 : index
    %c0_1 = arith.constant 0 : index
    %3 = vector.load %arg2[%c0, %c0_1] : memref<8x8xbf16, #tpu.memory_space<vmem>>, vector<8x8xbf16>
    %c0_2 = arith.constant 0 : index
    %c0_3 = arith.constant 0 : index
    %4 = vector.load %arg15[%c0_2, %c0_3] : memref<8x128xf32, #tpu.memory_space<vmem>>, vector<8x128xf32>
    %5 = arith.truncf %4 : vector<8x128xf32> to vector<8x128xbf16>
    %cst = arith.constant dense<0.000000e+00> : vector<8x128xf32>
    %6 = tpu.matmul %3, %5, %cst {dimension_numbers = #tpu.dot_dimension_numbers<[1], [0], [0], [1], [0, 0, 1, 1], [], []>} : vector<8x8xbf16>, vector<8x128xbf16>, vector<8x128xf32> -> vector<8x128xf32>
    %c0_4 = arith.constant 0 : index
    %c0_5 = arith.constant 0 : index
    %c0_6 = arith.constant 0 : index
    %7 = vector.load %arg4[%c0_4, %c0_5, %c0_6] : memref<1x8x128xbf16, #tpu.memory_space<vmem>>, vector<1x8x128xbf16>
    %8 = vector.shape_cast %7 : vector<1x8x128xbf16> to vector<8x128xbf16>
    %9 = arith.extf %8 : vector<8x128xbf16> to vector<8x128xf32>
    %10 = arith.addf %6, %9 : vector<8x128xf32>
    %11 = arith.truncf %10 : vector<8x128xf32> to vector<8x128xbf16>
    %c0_7 = arith.constant 0 : index
    %c0_8 = arith.constant 0 : index
    %c0_9 = arith.constant 0 : index
    %12 = vector.load %arg5[%c0_7, %c0_8, %c0_9] : memref<1x128x128xbf16, #tpu.memory_space<vmem>>, vector<1x128x128xbf16>
    %13 = vector.shape_cast %12 : vector<1x128x128xbf16> to vector<128x128xbf16>
    %cst_10 = arith.constant dense<0.000000e+00> : vector<8x128xf32>
    %14 = tpu.matmul %11, %13, %cst_10 {dimension_numbers = #tpu.dot_dimension_numbers<[1], [0], [0], [1], [0, 0, 1, 1], [], []>} : vector<8x128xbf16>, vector<128x128xbf16>, vector<8x128xf32> -> vector<8x128xf32>
    %c0_11 = arith.constant 0 : index
    %c0_12 = arith.constant 0 : index
    %c0_13 = arith.constant 0 : index
    %15 = vector.load %arg6[%c0_11, %c0_12, %c0_13] : memref<1x1x128xf32, #tpu.memory_space<vmem>>, vector<1x1x128xf32>
    %16 = vector.shape_cast %15 : vector<1x1x128xf32> to vector<1x128xf32>
    %17 = vector.broadcast %16 : vector<1x128xf32> to vector<8x128xf32>
    %18 = arith.addf %14, %17 : vector<8x128xf32>
    %cst_14 = arith.constant 0.000000e+00 : f32
    %19 = vector.broadcast %cst_14 : f32 to vector<8x128xf32>
    %20 = arith.maximumf %18, %19 : vector<8x128xf32>
    %21 = arith.truncf %20 : vector<8x128xf32> to vector<8x128xbf16>
    %c0_15 = arith.constant 0 : index
    %c0_16 = arith.constant 0 : index
    %c0_17 = arith.constant 0 : index
    %22 = vector.load %arg7[%c0_15, %c0_16, %c0_17] : memref<1x128x128xbf16, #tpu.memory_space<vmem>>, vector<1x128x128xbf16>
    %23 = vector.shape_cast %22 : vector<1x128x128xbf16> to vector<128x128xbf16>
    %cst_18 = arith.constant dense<0.000000e+00> : vector<8x128xf32>
    %24 = tpu.matmul %21, %23, %cst_18 {dimension_numbers = #tpu.dot_dimension_numbers<[1], [0], [0], [1], [0, 0, 1, 1], [], []>} : vector<8x128xbf16>, vector<128x128xbf16>, vector<8x128xf32> -> vector<8x128xf32>
    %c0_19 = arith.constant 0 : index
    %c0_20 = arith.constant 0 : index
    %c0_21 = arith.constant 0 : index
    %25 = vector.load %arg8[%c0_19, %c0_20, %c0_21] : memref<1x1x128xf32, #tpu.memory_space<vmem>>, vector<1x1x128xf32>
    %26 = vector.shape_cast %25 : vector<1x1x128xf32> to vector<1x128xf32>
    %27 = vector.broadcast %26 : vector<1x128xf32> to vector<8x128xf32>
    %28 = arith.addf %24, %27 : vector<8x128xf32>
    %c0_22 = arith.constant 0 : index
    %c0_23 = arith.constant 0 : index
    %29 = vector.load %arg3[%c0_22, %c0_23] : memref<8x1xf32, #tpu.memory_space<vmem>>, vector<8x1xf32>
    %30 = vector.broadcast %29 : vector<8x1xf32> to vector<8x128xf32>
    %31 = arith.mulf %28, %30 : vector<8x128xf32>
    %cst_24 = arith.constant dense<0.000000e+00> : vector<128xf32>
    %32 = vector.multi_reduction <add>, %31, %cst_24 [0] : vector<8x128xf32> to vector<128xf32>
    %33 = vector.shape_cast %32 : vector<128xf32> to vector<1x128xf32>
    %cst_25 = arith.constant 1.250000e-01 : f32
    %34 = vector.broadcast %cst_25 : f32 to vector<1x128xf32>
    %35 = arith.mulf %33, %34 : vector<1x128xf32>
    %36 = arith.mulf %31, %31 : vector<8x128xf32>
    %cst_26 = arith.constant dense<0.000000e+00> : vector<128xf32>
    %37 = vector.multi_reduction <add>, %36, %cst_26 [0] : vector<8x128xf32> to vector<128xf32>
    %38 = vector.shape_cast %37 : vector<128xf32> to vector<1x128xf32>
    %cst_27 = arith.constant 1.250000e-01 : f32
    %39 = vector.broadcast %cst_27 : f32 to vector<1x128xf32>
    %40 = arith.mulf %38, %39 : vector<1x128xf32>
    %41 = arith.mulf %35, %35 : vector<1x128xf32>
    %42 = arith.subf %40, %41 : vector<1x128xf32>
    %43 = vector.broadcast %35 : vector<1x128xf32> to vector<8x128xf32>
    %44 = arith.subf %31, %43 : vector<8x128xf32>
    %cst_28 = arith.constant 9.99999974E-6 : f32
    %45 = vector.broadcast %cst_28 : f32 to vector<1x128xf32>
    %46 = arith.addf %42, %45 : vector<1x128xf32>
    %47 = math.rsqrt %46 : vector<1x128xf32>
    %48 = vector.broadcast %47 : vector<1x128xf32> to vector<8x128xf32>
    %49 = arith.mulf %44, %48 : vector<8x128xf32>
    %c0_29 = arith.constant 0 : index
    %c0_30 = arith.constant 0 : index
    %c0_31 = arith.constant 0 : index
    %50 = vector.load %arg9[%c0_29, %c0_30, %c0_31] : memref<1x1x128xf32, #tpu.memory_space<vmem>>, vector<1x1x128xf32>
    %51 = vector.shape_cast %50 : vector<1x1x128xf32> to vector<1x128xf32>
    %52 = vector.broadcast %51 : vector<1x128xf32> to vector<8x128xf32>
    %53 = arith.mulf %49, %52 : vector<8x128xf32>
    %c0_32 = arith.constant 0 : index
    %c0_33 = arith.constant 0 : index
    %c0_34 = arith.constant 0 : index
    %54 = vector.load %arg10[%c0_32, %c0_33, %c0_34] : memref<1x1x128xf32, #tpu.memory_space<vmem>>, vector<1x1x128xf32>
    %55 = vector.shape_cast %54 : vector<1x1x128xf32> to vector<1x128xf32>
    %56 = vector.broadcast %55 : vector<1x128xf32> to vector<8x128xf32>
    %57 = arith.addf %53, %56 : vector<8x128xf32>
    %c4_i32 = arith.constant 4 : i32
    %58 = arith.cmpi eq, %arg0, %c4_i32 : i32
    %true = arith.constant true
    %59 = arith.xori %58, %true : i1
    %60 = arith.extui %59 : i1 to i32
    %c0_i32_35 = arith.constant 0 : i32
    %61 = arith.cmpi ne, %60, %c0_i32_35 : i32
    scf.if %61 {
      %cst_37 = arith.constant 0.000000e+00 : f32
      %64 = vector.broadcast %cst_37 : f32 to vector<8x128xf32>
      %65 = arith.maximumf %57, %64 : vector<8x128xf32>
      %c0_38 = arith.constant 0 : index
      %c0_39 = arith.constant 0 : index
      %66 = vector.load %arg15[%c0_38, %c0_39] : memref<8x128xf32, #tpu.memory_space<vmem>>, vector<8x128xf32>
      tpu.vector_store %arg15[%c0_38, %c0_39], %65 {strides = array<i32>} : memref<8x128xf32, #tpu.memory_space<vmem>>, vector<8x128xf32>,
    } else {
    }
    %62 = arith.extui %58 : i1 to i32
    %c0_i32_36 = arith.constant 0 : i32
    %63 = arith.cmpi ne, %62, %c0_i32_36 : i32
    scf.if %63 {
      %64 = arith.truncf %57 : vector<8x128xf32> to vector<8x128xbf16>
      %c0_37 = arith.constant 0 : index
      %c0_38 = arith.constant 0 : index
      %65 = vector.load %arg11[%c0_37, %c0_38] : memref<128x128xbf16, #tpu.memory_space<vmem>>, vector<128x128xbf16>
      %cst_39 = arith.constant dense<0.000000e+00> : vector<8x128xf32>
      %66 = tpu.matmul %64, %65, %cst_39 {dimension_numbers = #tpu.dot_dimension_numbers<[1], [0], [0], [1], [0, 0, 1, 1], [], []>} : vector<8x128xbf16>, vector<128x128xbf16>, vector<8x128xf32> -> vector<8x128xf32>
      %c0_40 = arith.constant 0 : index
      %c0_41 = arith.constant 0 : index
      %67 = vector.load %arg12[%c0_40, %c0_41] : memref<1x128xf32, #tpu.memory_space<vmem>>, vector<1x128xf32>
      %68 = vector.broadcast %67 : vector<1x128xf32> to vector<8x128xf32>
      %69 = arith.addf %66, %68 : vector<8x128xf32>
      %c0_42 = arith.constant 0 : index
      %c0_43 = arith.constant 0 : index
      %70 = vector.load %arg13[%c0_42, %c0_43] : memref<8x8xf32, #tpu.memory_space<vmem>>, vector<8x8xf32>
      %cst_44 = arith.constant dense<0.000000e+00> : vector<8x128xf32>
      %71 = tpu.matmul %70, %69, %cst_44 {dimension_numbers = #tpu.dot_dimension_numbers<[1], [0], [0], [1], [0, 0, 1, 1], [], []>} : vector<8x8xf32>, vector<8x128xf32>, vector<8x128xf32> -> vector<8x128xf32>
      %c0_45 = arith.constant 0 : index
      %c0_46 = arith.constant 0 : index
      %72 = vector.load %arg14[%c0_45, %c0_46] : memref<8x128xf32, #tpu.memory_space<vmem>>, vector<8x128xf32>
      tpu.vector_store %arg14[%c0_45, %c0_46], %71 {strides = array<i32>} : memref<8x128xf32, #tpu.memory_space<vmem>>, vector<8x128xf32>,
    } else {
    }
    return
  }
  func.func @transform_0(%arg0: i32) -> (i32, i32) {
    %c0_i32 = arith.constant 0 : i32
    %c0_i32_0 = arith.constant 0 : i32
    %c0_i32_1 = arith.constant 0 : i32
    return %c0_i32, %c0_i32_0 : i32, i32
  }
  func.func @transform_1(%arg0: i32) -> (i32, i32) {
    %c0_i32 = arith.constant 0 : i32
    %c0_i32_0 = arith.constant 0 : i32
    %c0_i32_1 = arith.constant 0 : i32
    return %c0_i32, %c0_i32_0 : i32, i32
  }
  func.func @transform_2(%arg0: i32) -> (i32, i32) {
    %c0_i32 = arith.constant 0 : i32
    %c0_i32_0 = arith.constant 0 : i32
    %c0_i32_1 = arith.constant 0 : i32
    return %c0_i32, %c0_i32_0 : i32, i32
  }
  func.func @transform_3(%arg0: i32) -> (i32, i32, i32) {
    %c0_i32 = arith.constant 0 : i32
    %c0_i32_0 = arith.constant 0 : i32
    %c0_i32_1 = arith.constant 0 : i32
    return %arg0, %c0_i32, %c0_i32_0 : i32, i32, i32
  }
  func.func @transform_4(%arg0: i32) -> (i32, i32, i32) {
    %c0_i32 = arith.constant 0 : i32
    %c0_i32_0 = arith.constant 0 : i32
    %c0_i32_1 = arith.constant 0 : i32
    return %arg0, %c0_i32, %c0_i32_0 : i32, i32, i32
  }
  func.func @transform_5(%arg0: i32) -> (i32, i32, i32) {
    %c0_i32 = arith.constant 0 : i32
    %c0_i32_0 = arith.constant 0 : i32
    %c0_i32_1 = arith.constant 0 : i32
    return %arg0, %c0_i32, %c0_i32_0 : i32, i32, i32
  }
  func.func @transform_6(%arg0: i32) -> (i32, i32, i32) {
    %c0_i32 = arith.constant 0 : i32
    %c0_i32_0 = arith.constant 0 : i32
    %c0_i32_1 = arith.constant 0 : i32
    return %arg0, %c0_i32, %c0_i32_0 : i32, i32, i32
  }
  func.func @transform_7(%arg0: i32) -> (i32, i32, i32) {
    %c0_i32 = arith.constant 0 : i32
    %c0_i32_0 = arith.constant 0 : i32
    %c0_i32_1 = arith.constant 0 : i32
    return %arg0, %c0_i32, %c0_i32_0 : i32, i32, i32
  }
  func.func @transform_8(%arg0: i32) -> (i32, i32, i32) {
    %c0_i32 = arith.constant 0 : i32
    %c0_i32_0 = arith.constant 0 : i32
    %c0_i32_1 = arith.constant 0 : i32
    return %arg0, %c0_i32, %c0_i32_0 : i32, i32, i32
  }
  func.func @transform_9(%arg0: i32) -> (i32, i32, i32) {
    %c0_i32 = arith.constant 0 : i32
    %c0_i32_0 = arith.constant 0 : i32
    %c0_i32_1 = arith.constant 0 : i32
    return %arg0, %c0_i32, %c0_i32_0 : i32, i32, i32
  }
  func.func @transform_10(%arg0: i32) -> (i32, i32) {
    %c0_i32 = arith.constant 0 : i32
    %c0_i32_0 = arith.constant 0 : i32
    %c0_i32_1 = arith.constant 0 : i32
    return %c0_i32, %c0_i32_0 : i32, i32
  }
  func.func @transform_11(%arg0: i32) -> (i32, i32) {
    %c0_i32 = arith.constant 0 : i32
    %c0_i32_0 = arith.constant 0 : i32
    %c0_i32_1 = arith.constant 0 : i32
    return %c0_i32, %c0_i32_0 : i32, i32
  }
  func.func @transform_12(%arg0: i32) -> (i32, i32) {
    %c0_i32 = arith.constant 0 : i32
    %c0_i32_0 = arith.constant 0 : i32
    %c0_i32_1 = arith.constant 0 : i32
    return %c0_i32, %c0_i32_0 : i32, i32
  }
  func.func @transform_13(%arg0: i32) -> (i32, i32) {
    %c0_i32 = arith.constant 0 : i32
    %c0_i32_0 = arith.constant 0 : i32
    %c0_i32_1 = arith.constant 0 : i32
    return %c0_i32, %c0_i32_0 : i32, i32
  }
}

</mosaic_0001>

<llo_original>
// kernel: tpu_custom_call.1
$region0: #{tpu_custom_call.1}
  #allocation0 [shape = 'u32[]', space=smem, size = 0x4, offset = 0x4, fixed_abs, tag = 'smem constant byte address 0x4 - core index']
  #allocation1 [shape = 'u32[144,128]{1,0:T(1,128)}', space=vmem, size = 0x12000, scoped, tag = 'internal scratch']
  #allocation2 [shape = 'f32[8,128]{1,0:T(8,128)}', space=vmem, size = 0x1000, scoped, tag = 'scratch operand']
  %s0 = inlined_call_operand.hbm [shape: f32[8,128], index: 0, kind: input, shape index: {}]
  %s1 = inlined_call_operand.hbm [shape: bf16[8,8], index: 1, kind: input, shape index: {}]
  %s2 = inlined_call_operand.vmem [shape: f32[8,1], index: 2, kind: input, shape index: {}]
  %s3 = inlined_call_operand.vmem [shape: bf16[5,8,128], index: 3, kind: input, shape index: {}]
  %s4 = inlined_call_operand.hbm [shape: bf16[5,128,128], index: 4, kind: input, shape index: {}]
  %s5 = inlined_call_operand.hbm [shape: f32[5,1,128], index: 5, kind: input, shape index: {}]
  %s6 = inlined_call_operand.hbm [shape: bf16[5,128,128], index: 6, kind: input, shape index: {}]
  %s7 = inlined_call_operand.vmem [shape: f32[5,1,128], index: 7, kind: input, shape index: {}]
  %s8 = inlined_call_operand.vmem [shape: f32[5,1,128], index: 8, kind: input, shape index: {}]
  %s9 = inlined_call_operand.vmem [shape: f32[5,1,128], index: 9, kind: input, shape index: {}]
  %s10 = inlined_call_operand.hbm [shape: bf16[128,128], index: 10, kind: input, shape index: {}]
  %s11 = inlined_call_operand.vmem [shape: f32[1,128], index: 11, kind: input, shape index: {}]
  %s12 = inlined_call_operand.vmem [shape: f32[8,8], index: 12, kind: input, shape index: {}]
  %s13 = inlined_call_operand.hbm [shape: f32[8,128], index: 13, kind: output, shape index: {}]
  %s14 = sld [smem:[#allocation0]]
  $region121: #{tpu_custom_call.1} parent=0
    _
  %s16 = ssub.s32 1, %s14
  %s17 = scalar_select 0, %s16, %s14
  $region1: #{tpu_custom_call.1} parent=0
    #allocation3 [shape = 'u8[4096]{0}', space=vmem, size = 0x1000, scoped, tag = 'input window, operand 0, single buffered']
    #allocation4 [shape = 's32[2]{0}', space=sflag, size = 0x8, scoped, tag = 'scoped memory for tpu_custom_call.1']
    #allocation5 [shape = 's32[2]{0}', space=sflag, size = 0x8, scoped, tag = 'scoped memory for tpu_custom_call.1']
    #allocation6 [shape = 'u8[2048]{0}', space=vmem, size = 0x800, scoped, tag = 'input window, operand 1, single buffered']
    #allocation7 [shape = 's32[1]{0}', space=sflag, size = 0x4, scoped, tag = 'scoped memory for tpu_custom_call.1']
    #allocation8 [shape = 'u8[65536]{0}', space=vmem, size = 0x10000, scoped, tag = 'input window, operand 4']
    #allocation9 [shape = 'u8[1024]{0}', space=vmem, size = 0x400, scoped, tag = 'input window, operand 5']
    #allocation10 [shape = 'u8[65536]{0}', space=vmem, size = 0x10000, scoped, tag = 'input window, operand 6']
    #allocation11 [shape = 'u8[32768]{0}', space=vmem, size = 0x8000, scoped, tag = 'input window, operand 10, single buffered']
    #allocation12 [shape = 'u8[4096]{0}', space=vmem, size = 0x1000, scoped, tag = 'output window, operand 0, single buffered']
    %18 = vsyncpa [#allocation4], 0
    %19 = vsyncpa [#allocation7], 0
    %20 = vsyncpa [#allocation5], 0
    loop: start=0, step=1, limit=7
    $region2: #{tpu_custom_call.1} parent=1 // loop_pre_header
      _
    $region3: #{tpu_custom_call.1} parent=1 // loop_header
      %s22 = sphi 0, %s26
      %p23 = scmp.ge.s32.totalorder %s22, 7
      %s30 = sphi 0, %s30
      %s32 = sphi 0, %s30
      %s33 = sphi 0, %s32
      %s47 = sphi 0, %s33
      %s51 = sphi 0, %s51
      %s53 = sphi 0, %s51
      %s54 = sphi 0, %s53
      %s68 = sphi 0, %s54
      %s72 = sphi 0, %s72
      %s74 = sphi 0, %s72
      %s75 = sphi 0, %s74
      %s89 = sphi 0, %s75
      %s95 = sphi 0, %s97
      %s98 = sphi 0, %s95
      %s99 = sphi 0, %s98
      %s115 = sphi 0, %s99
      %s121 = sphi 0, %s123
      %s124 = sphi 0, %s121
      %s125 = sphi 0, %s124
      %s141 = sphi 0, %s125
      %s147 = sphi 0, %s149
      %s150 = sphi 0, %s147
      %s151 = sphi 0, %s150
      %s167 = sphi 0, %s151
      %s173 = sphi 0, %s175
      %s176 = sphi 0, %s173
      %s177 = sphi 0, %s176
      %s193 = sphi 0, %s177
      %s199 = sphi 0, %s201
      %s202 = sphi 0, %s199
      %s203 = sphi 0, %s202
      %s219 = sphi 0, %s203
      %s225 = sphi 0, %s227
      %s228 = sphi 0, %s225
      %s229 = sphi 0, %s228
      %s245 = sphi 0, %s229
      %s251 = sphi 0, %s253
      %s254 = sphi 0, %s251
      %s255 = sphi 0, %s254
      %s271 = sphi 0, %s255
      %s275 = sphi 0, %s275
      %s277 = sphi 0, %s275
      %s278 = sphi 0, %s277
      %s292 = sphi 0, %s278
      %s296 = sphi 0, %s296
      %s298 = sphi 0, %s296
      %s299 = sphi 0, %s298
      %s313 = sphi 0, %s299
      %s317 = sphi 0, %s317
      %s319 = sphi 0, %s317
      %s320 = sphi 0, %s319
      %s334 = sphi 0, %s320
      %s338 = sphi 0, %s338
      %s340 = sphi 0, %s338
      %s341 = sphi 0, %s340
      %s355 = sphi 0, %s341
    $region4: #{tpu_custom_call.1} parent=1 // loop_header_branch
      %25 = sbr.rel (%p23) target = $region8
    $region5: #{tpu_custom_call.1} parent=1 // loop_body
      %s27 = ssub.s32 %s22, 1
      %s28 = ssub.s32 %s22, 2
      %s29 = sadd.s32 %s22, 1
      %s31 = sadd.s32 %s30, 1
      %p34 = scmp.eq.s32.totalorder %s22, 4
      %p35 = scmp.ne.s32.totalorder %s30, %s32
      %p36 = scmp.eq.s32.totalorder %s22, 0
      %p37 = por %p35, %p36
      %p38 = scmp.ne.s32.totalorder %s30, %s32
      %p39 = scmp.eq.s32.totalorder %s27, 4
      %p40 = por %p38, %p39
      %p41 = scmp.ne.s32.totalorder %s32, %s33
      %p42 = scmp.eq.s32.totalorder %s27, 0
      %p43 = por %p41, %p42
      %p44 = scmp.ne.s32.totalorder %s32, %s33
      %p45 = scmp.eq.s32.totalorder %s28, 4
      %p46 = por %p44, %p45
      %p48 = scmp.ne.s32.totalorder %s33, %s47
      %p49 = scmp.eq.s32.totalorder %s28, 0
      %p50 = por %p48, %p49
      %s52 = sadd.s32 %s51, 1
      %p55 = scmp.eq.s32.totalorder %s22, 4
      %p56 = scmp.ne.s32.totalorder %s51, %s53
      %p57 = scmp.eq.s32.totalorder %s22, 0
      %p58 = por %p56, %p57
      %p59 = scmp.ne.s32.totalorder %s51, %s53
      %p60 = scmp.eq.s32.totalorder %s27, 4
      %p61 = por %p59, %p60
      %p62 = scmp.ne.s32.totalorder %s53, %s54
      %p63 = scmp.eq.s32.totalorder %s27, 0
      %p64 = por %p62, %p63
      %p65 = scmp.ne.s32.totalorder %s53, %s54
      %p66 = scmp.eq.s32.totalorder %s28, 4
      %p67 = por %p65, %p66
      %p69 = scmp.ne.s32.totalorder %s54, %s68
      %p70 = scmp.eq.s32.totalorder %s28, 0
      %p71 = por %p69, %p70
      %s73 = sadd.s32 %s72, 1
      %p76 = scmp.eq.s32.totalorder %s22, 4
      %p77 = scmp.ne.s32.totalorder %s72, %s74
      %p78 = scmp.eq.s32.totalorder %s22, 0
      %p79 = por %p77, %p78
      %p80 = scmp.ne.s32.totalorder %s72, %s74
      %p81 = scmp.eq.s32.totalorder %s27, 4
      %p82 = por %p80, %p81
      %p83 = scmp.ne.s32.totalorder %s74, %s75
      %p84 = scmp.eq.s32.totalorder %s27, 0
      %p85 = por %p83, %p84
      %p86 = scmp.ne.s32.totalorder %s74, %s75
      %p87 = scmp.eq.s32.totalorder %s28, 4
      %p88 = por %p86, %p87
      %p90 = scmp.ne.s32.totalorder %s75, %s89
      %p91 = scmp.eq.s32.totalorder %s28, 0
      %p92 = por %p90, %p91
      %s93 = ssub.s32 %s22, %s29
      %p94 = scmp.eq.s32.totalorder %s93, 0
      %s96 = sadd.s32 %s95, 1
      %s97 = scalar_select %p94, %s95, %s96
      %p100 = pneg %p94
      %p101 = scmp.eq.s32.totalorder %s22, 4
      %p102 = por %p100, %p101
      %p103 = scmp.ne.s32.totalorder %s95, %s98
      %p104 = scmp.eq.s32.totalorder %s22, 0
      %p105 = por %p103, %p104
      %p106 = scmp.ne.s32.totalorder %s95, %s98
      %p107 = scmp.eq.s32.totalorder %s27, 4
      %p108 = por %p106, %p107
      %p109 = scmp.ne.s32.totalorder %s98, %s99
      %p110 = scmp.eq.s32.totalorder %s27, 0
      %p111 = por %p109, %p110
      %p112 = scmp.ne.s32.totalorder %s98, %s99
      %p113 = scmp.eq.s32.totalorder %s28, 4
      %p114 = por %p112, %p113
      %p116 = scmp.ne.s32.totalorder %s99, %s115
      %p117 = scmp.eq.s32.totalorder %s28, 0
      %p118 = por %p116, %p117
      %s119 = ssub.s32 %s22, %s29
      %p120 = scmp.eq.s32.totalorder %s119, 0
      %s122 = sadd.s32 %s121, 1
      %s123 = scalar_select %p120, %s121, %s122
      %p126 = pneg %p120
      %p127 = scmp.eq.s32.totalorder %s22, 4
      %p128 = por %p126, %p127
      %p129 = scmp.ne.s32.totalorder %s121, %s124
      %p130 = scmp.eq.s32.totalorder %s22, 0
      %p131 = por %p129, %p130
      %p132 = scmp.ne.s32.totalorder %s121, %s124
      %p133 = scmp.eq.s32.totalorder %s27, 4
      %p134 = por %p132, %p133
      %p135 = scmp.ne.s32.totalorder %s124, %s125
      %p136 = scmp.eq.s32.totalorder %s27, 0
      %p137 = por %p135, %p136
      %p138 = scmp.ne.s32.totalorder %s124, %s125
      %p139 = scmp.eq.s32.totalorder %s28, 4
      %p140 = por %p138, %p139
      %p142 = scmp.ne.s32.totalorder %s125, %s141
      %p143 = scmp.eq.s32.totalorder %s28, 0
      %p144 = por %p142, %p143
      %s145 = ssub.s32 %s22, %s29
      %p146 = scmp.eq.s32.totalorder %s145, 0
      %s148 = sadd.s32 %s147, 1
      %s149 = scalar_select %p146, %s147, %s148
      %p152 = pneg %p146
      %p153 = scmp.eq.s32.totalorder %s22, 4
      %p154 = por %p152, %p153
      %p155 = scmp.ne.s32.totalorder %s147, %s150
      %p156 = scmp.eq.s32.totalorder %s22, 0
      %p157 = por %p155, %p156
      %p158 = scmp.ne.s32.totalorder %s147, %s150
      %p159 = scmp.eq.s32.totalorder %s27, 4
      %p160 = por %p158, %p159
      %p161 = scmp.ne.s32.totalorder %s150, %s151
      %p162 = scmp.eq.s32.totalorder %s27, 0
      %p163 = por %p161, %p162
      %p164 = scmp.ne.s32.totalorder %s150, %s151
      %p165 = scmp.eq.s32.totalorder %s28, 4
      %p166 = por %p164, %p165
      %p168 = scmp.ne.s32.totalorder %s151, %s167
      %p169 = scmp.eq.s32.totalorder %s28, 0
      %p170 = por %p168, %p169
      %s171 = ssub.s32 %s22, %s29
      %p172 = scmp.eq.s32.totalorder %s171, 0
      %s174 = sadd.s32 %s173, 1
      %s175 = scalar_select %p172, %s173, %s174
      %p178 = pneg %p172
      %p179 = scmp.eq.s32.totalorder %s22, 4
      %p180 = por %p178, %p179
      %p181 = scmp.ne.s32.totalorder %s173, %s176
      %p182 = scmp.eq.s32.totalorder %s22, 0
      %p183 = por %p181, %p182
      %p184 = scmp.ne.s32.totalorder %s173, %s176
      %p185 = scmp.eq.s32.totalorder %s27, 4
      %p186 = por %p184, %p185
      %p187 = scmp.ne.s32.totalorder %s176, %s177
      %p188 = scmp.eq.s32.totalorder %s27, 0
      %p189 = por %p187, %p188
      %p190 = scmp.ne.s32.totalorder %s176, %s177
      %p191 = scmp.eq.s32.totalorder %s28, 4
      %p192 = por %p190, %p191
      %p194 = scmp.ne.s32.totalorder %s177, %s193
      %p195 = scmp.eq.s32.totalorder %s28, 0
      %p196 = por %p194, %p195
      %s197 = ssub.s32 %s22, %s29
      %p198 = scmp.eq.s32.totalorder %s197, 0
      %s200 = sadd.s32 %s199, 1
      %s201 = scalar_select %p198, %s199, %s200
      %p204 = pneg %p198
      %p205 = scmp.eq.s32.totalorder %s22, 4
      %p206 = por %p204, %p205
      %p207 = scmp.ne.s32.totalorder %s199, %s202
      %p208 = scmp.eq.s32.totalorder %s22, 0
      %p209 = por %p207, %p208
      %p210 = scmp.ne.s32.totalorder %s199, %s202
      %p211 = scmp.eq.s32.totalorder %s27, 4
      %p212 = por %p210, %p211
      %p213 = scmp.ne.s32.totalorder %s202, %s203
      %p214 = scmp.eq.s32.totalorder %s27, 0
      %p215 = por %p213, %p214
      %p216 = scmp.ne.s32.totalorder %s202, %s203
      %p217 = scmp.eq.s32.totalorder %s28, 4
      %p218 = por %p216, %p217
      %p220 = scmp.ne.s32.totalorder %s203, %s219
      %p221 = scmp.eq.s32.totalorder %s28, 0
      %p222 = por %p220, %p221
      %s223 = ssub.s32 %s22, %s29
      %p224 = scmp.eq.s32.totalorder %s223, 0
      %s226 = sadd.s32 %s225, 1
      %s227 = scalar_select %p224, %s225, %s226
      %p230 = pneg %p224
      %p231 = scmp.eq.s32.totalorder %s22, 4
      %p232 = por %p230, %p231
      %p233 = scmp.ne.s32.totalorder %s225, %s228
      %p234 = scmp.eq.s32.totalorder %s22, 0
      %p235 = por %p233, %p234
      %p236 = scmp.ne.s32.totalorder %s225, %s228
      %p237 = scmp.eq.s32.totalorder %s27, 4
      %p238 = por %p236, %p237
      %p239 = scmp.ne.s32.totalorder %s228, %s229
      %p240 = scmp.eq.s32.totalorder %s27, 0
      %p241 = por %p239, %p240
      %p242 = scmp.ne.s32.totalorder %s228, %s229
      %p243 = scmp.eq.s32.totalorder %s28, 4
      %p244 = por %p242, %p243
      %p246 = scmp.ne.s32.totalorder %s229, %s245
      %p247 = scmp.eq.s32.totalorder %s28, 0
      %p248 = por %p246, %p247
      %s249 = ssub.s32 %s22, %s29
      %p250 = scmp.eq.s32.totalorder %s249, 0
      %s252 = sadd.s32 %s251, 1
      %s253 = scalar_select %p250, %s251, %s252
      %p256 = pneg %p250
      %p257 = scmp.eq.s32.totalorder %s22, 4
      %p258 = por %p256, %p257
      %p259 = scmp.ne.s32.totalorder %s251, %s254
      %p260 = scmp.eq.s32.totalorder %s22, 0
      %p261 = por %p259, %p260
      %p262 = scmp.ne.s32.totalorder %s251, %s254
      %p263 = scmp.eq.s32.totalorder %s27, 4
      %p264 = por %p262, %p263
      %p265 = scmp.ne.s32.totalorder %s254, %s255
      %p266 = scmp.eq.s32.totalorder %s27, 0
      %p267 = por %p265, %p266
      %p268 = scmp.ne.s32.totalorder %s254, %s255
      %p269 = scmp.eq.s32.totalorder %s28, 4
      %p270 = por %p268, %p269
      %p272 = scmp.ne.s32.totalorder %s255, %s271
      %p273 = scmp.eq.s32.totalorder %s28, 0
      %p274 = por %p272, %p273
      %s276 = sadd.s32 %s275, 1
      %p279 = scmp.eq.s32.totalorder %s22, 4
      %p280 = scmp.ne.s32.totalorder %s275, %s277
      %p281 = scmp.eq.s32.totalorder %s22, 0
      %p282 = por %p280, %p281
      %p283 = scmp.ne.s32.totalorder %s275, %s277
      %p284 = scmp.eq.s32.totalorder %s27, 4
      %p285 = por %p283, %p284
      %p286 = scmp.ne.s32.totalorder %s277, %s278
      %p287 = scmp.eq.s32.totalorder %s27, 0
      %p288 = por %p286, %p287
      %p289 = scmp.ne.s32.totalorder %s277, %s278
      %p290 = scmp.eq.s32.totalorder %s28, 4
      %p291 = por %p289, %p290
      %p293 = scmp.ne.s32.totalorder %s278, %s292
      %p294 = scmp.eq.s32.totalorder %s28, 0
      %p295 = por %p293, %p294
      %s297 = sadd.s32 %s296, 1
      %p300 = scmp.eq.s32.totalorder %s22, 4
      %p301 = scmp.ne.s32.totalorder %s296, %s298
      %p302 = scmp.eq.s32.totalorder %s22, 0
      %p303 = por %p301, %p302
      %p304 = scmp.ne.s32.totalorder %s296, %s298
      %p305 = scmp.eq.s32.totalorder %s27, 4
      %p306 = por %p304, %p305
      %p307 = scmp.ne.s32.totalorder %s298, %s299
      %p308 = scmp.eq.s32.totalorder %s27, 0
      %p309 = por %p307, %p308
      %p310 = scmp.ne.s32.totalorder %s298, %s299
      %p311 = scmp.eq.s32.totalorder %s28, 4
      %p312 = por %p310, %p311
      %p314 = scmp.ne.s32.totalorder %s299, %s313
      %p315 = scmp.eq.s32.totalorder %s28, 0
      %p316 = por %p314, %p315
      %s318 = sadd.s32 %s317, 1
      %p321 = scmp.eq.s32.totalorder %s22, 4
      %p322 = scmp.ne.s32.totalorder %s317, %s319
      %p323 = scmp.eq.s32.totalorder %s22, 0
      %p324 = por %p322, %p323
      %p325 = scmp.ne.s32.totalorder %s317, %s319
      %p326 = scmp.eq.s32.totalorder %s27, 4
      %p327 = por %p325, %p326
      %p328 = scmp.ne.s32.totalorder %s319, %s320
      %p329 = scmp.eq.s32.totalorder %s27, 0
      %p330 = por %p328, %p329
      %p331 = scmp.ne.s32.totalorder %s319, %s320
      %p332 = scmp.eq.s32.totalorder %s28, 4
      %p333 = por %p331, %p332
      %p335 = scmp.ne.s32.totalorder %s320, %s334
      %p336 = scmp.eq.s32.totalorder %s28, 0
      %p337 = por %p335, %p336
      %s339 = sadd.s32 %s338, 1
      %p342 = scmp.eq.s32.totalorder %s22, 4
      %p343 = scmp.ne.s32.totalorder %s338, %s340
      %p344 = scmp.eq.s32.totalorder %s22, 0
      %p345 = por %p343, %p344
      %p346 = scmp.ne.s32.totalorder %s338, %s340
      %p347 = scmp.eq.s32.totalorder %s27, 4
      %p348 = por %p346, %p347
      %p349 = scmp.ne.s32.totalorder %s340, %s341
      %p350 = scmp.eq.s32.totalorder %s27, 0
      %p351 = por %p349, %p350
      %p352 = scmp.ne.s32.totalorder %s340, %s341
      %p353 = scmp.eq.s32.totalorder %s28, 4
      %p354 = por %p352, %p353
      %p356 = scmp.ne.s32.totalorder %s341, %s355
      %p357 = scmp.eq.s32.totalorder %s28, 0
      %p358 = por %p356, %p357
      %p359 = scmp.le.s32.totalorder 1, %s22
      %p360 = scmp.lt.s32.totalorder %s22, 6
      %p361 = pnand %p359, %p360
      %p362 = pneg %p361
      // Predicated region
      $region9: #{tpu_custom_call.1} parent=5 // pred_check
        _
      $region10: #{tpu_custom_call.1} parent=5 // pred_check_branch
        %364 = sbr.rel (%p361) target = $region12
      $region11: #{tpu_custom_call.1} parent=5 // pred_region
        %s365 = ssub.s32 %s22, 1
        // Predicated region
        $region13: #{tpu_custom_call.1} parent=11 // pred_check
          %p366 = pneg %p43
        $region14: #{tpu_custom_call.1} parent=11 // pred_check_branch
          %368 = sbr.rel (%p366) target = $region16
        $region15: #{tpu_custom_call.1} parent=11 // pred_region
          %s370 = ssub.s32 128, 128
          %371 = vsyncadd [#allocation4], %s370
          %s373 = sshll.u32 [#allocation3], 4
          %s374 = int_to_ptr.vmem [resolvable:$true] %s373
          %376 = dma.hbm_to_vmem [thread:$0]  %s0, 128, %s374, [#allocation4]
        $region16: #{tpu_custom_call.1} parent=11 // pred_fallthru
          _
        // Predicated region
        $region17: #{tpu_custom_call.1} parent=11 // pred_check
          %p377 = pneg %p64
        $region18: #{tpu_custom_call.1} parent=11 // pred_check_branch
          %379 = sbr.rel (%p377) target = $region20
        $region19: #{tpu_custom_call.1} parent=11 // pred_region
          %s381 = ssub.s32 64, 64
          %382 = vsyncadd [#allocation7], %s381
          %s384 = sshll.u32 [#allocation6], 4
          %s385 = int_to_ptr.vmem [resolvable:$true] %s384
          %387 = dma.hbm_to_vmem [thread:$0]  %s1, 64, %s385, [#allocation7]
        $region20: #{tpu_custom_call.1} parent=11 // pred_fallthru
          _
        // Predicated region
        $region21: #{tpu_custom_call.1} parent=11 // pred_check
          %p388 = pneg %p85
        $region22: #{tpu_custom_call.1} parent=11 // pred_check_branch
          %390 = sbr.rel (%p388) target = $region24
        $region23: #{tpu_custom_call.1} parent=11 // pred_region
          _
        $region24: #{tpu_custom_call.1} parent=11 // pred_fallthru
          _
        // Predicated region
        $region25: #{tpu_custom_call.1} parent=11 // pred_check
          %p391 = pneg %p288
        $region26: #{tpu_custom_call.1} parent=11 // pred_check_branch
          %393 = sbr.rel (%p391) target = $region28
        $region27: #{tpu_custom_call.1} parent=11 // pred_region
          %s395 = ssub.s32 1024, 1024
          %396 = vsyncadd [#allocation7], %s395
          %s397 = sshll.u32 [#allocation11], 4
          %s398 = int_to_ptr.vmem [resolvable:$true] %s397
          %403 = dma.hbm_to_vmem [thread:$0]  %s10, 1024, %s398, [#allocation7], 64, 64, 4
        $region28: #{tpu_custom_call.1} parent=11 // pred_fallthru
          _
        // Predicated region
        $region29: #{tpu_custom_call.1} parent=11 // pred_check
          %p404 = pneg %p309
        $region30: #{tpu_custom_call.1} parent=11 // pred_check_branch
          %406 = sbr.rel (%p404) target = $region32
        $region31: #{tpu_custom_call.1} parent=11 // pred_region
          _
        $region32: #{tpu_custom_call.1} parent=11 // pred_fallthru
          _
        // Predicated region
        $region33: #{tpu_custom_call.1} parent=11 // pred_check
          %p407 = pneg %p330
        $region34: #{tpu_custom_call.1} parent=11 // pred_check_branch
          %409 = sbr.rel (%p407) target = $region36
        $region35: #{tpu_custom_call.1} parent=11 // pred_region
          _
        $region36: #{tpu_custom_call.1} parent=11 // pred_fallthru
          _
      $region12: #{tpu_custom_call.1} parent=5 // pred_fallthru
        _
      %p410 = scmp.lt.s32.totalorder %s22, 5
      // Predicated region
      $region37: #{tpu_custom_call.1} parent=5 // pred_check
        %p411 = pneg %p410
      $region38: #{tpu_custom_call.1} parent=5 // pred_check_branch
        %413 = sbr.rel (%p411) target = $region40
      $region39: #{tpu_custom_call.1} parent=5 // pred_region
        // Predicated region
        $region41: #{tpu_custom_call.1} parent=39 // pred_check
          %p414 = pneg %p105
        $region42: #{tpu_custom_call.1} parent=39 // pred_check_branch
          %416 = sbr.rel (%p414) target = $region44
        $region43: #{tpu_custom_call.1} parent=39 // pred_region
          %p417 = scmp.lt.s32.totalorder %s22, 4
          %s418 = scalar_select %p417, %s22, 4
          %s419 = smul.addr %s418, 4
          %s420 = scalar_lea.vmem %s3, %s419
        $region44: #{tpu_custom_call.1} parent=39 // pred_fallthru
          _
        // Predicated region
        $region45: #{tpu_custom_call.1} parent=39 // pred_check
          %p421 = pneg %p131
        $region46: #{tpu_custom_call.1} parent=39 // pred_check_branch
          %423 = sbr.rel (%p421) target = $region48
        $region47: #{tpu_custom_call.1} parent=39 // pred_region
          %s424 = sand.u32 %s22, 1
          %s425 = scalar_lea.sflag [#allocation4], %s424
          %s426 = sand.u32 %s121, 1
          %s427 = smul.addr %s426, 64
          %s428 = scalar_lea.vmem [#allocation8], %s427
          %s430 = ssub.s32 1024, 1024
          %431 = vsyncadd %s425, %s430
          %s432 = smul.addr %s22, 16
          %s433 = smul.addr %s432, 64
          %s434 = scalar_lea.hbm %s4, %s433
          %s435 = sshll.u32 %s428, 4
          %s436 = int_to_ptr.vmem [resolvable:$true] %s435
          %441 = dma.hbm_to_vmem [thread:$0]  %s434, 1024, %s436, %s425, 64, 64, 4
        $region48: #{tpu_custom_call.1} parent=39 // pred_fallthru
          _
        // Predicated region
        $region49: #{tpu_custom_call.1} parent=39 // pred_check
          %p442 = pneg %p157
        $region50: #{tpu_custom_call.1} parent=39 // pred_check_branch
          %444 = sbr.rel (%p442) target = $region52
        $region51: #{tpu_custom_call.1} parent=39 // pred_region
          %s445 = sand.u32 %s22, 1
          %s446 = scalar_lea.sflag [#allocation4], %s445
          %s447 = sand.u32 %s147, 1
          %s448 = scalar_lea.vmem [#allocation9], %s447
          %s450 = ssub.s32 16, 16
          %451 = vsyncadd %s446, %s450
          %s452 = smul.addr %s22, 16
          %s453 = scalar_lea.hbm %s5, %s452
          %s455 = sshll.u32 %s448, 4
          %s456 = int_to_ptr.vmem [resolvable:$true] %s455
          %458 = dma.hbm_to_vmem [thread:$0]  %s453, 16, %s456, %s446
        $region52: #{tpu_custom_call.1} parent=39 // pred_fallthru
          _
        // Predicated region
        $region53: #{tpu_custom_call.1} parent=39 // pred_check
          %p459 = pneg %p183
        $region54: #{tpu_custom_call.1} parent=39 // pred_check_branch
          %461 = sbr.rel (%p459) target = $region56
        $region55: #{tpu_custom_call.1} parent=39 // pred_region
          %s462 = sand.u32 %s22, 1
          %s463 = scalar_lea.sflag [#allocation4], %s462
          %s464 = sand.u32 %s173, 1
          %s465 = smul.addr %s464, 64
          %s466 = scalar_lea.vmem [#allocation10], %s465
          %s468 = ssub.s32 1024, 1024
          %469 = vsyncadd %s463, %s468
          %s470 = smul.addr %s22, 16
          %s471 = smul.addr %s470, 64
          %s472 = scalar_lea.hbm %s6, %s471
          %s473 = sshll.u32 %s466, 4
          %s474 = int_to_ptr.vmem [resolvable:$true] %s473
          %479 = dma.hbm_to_vmem [thread:$0]  %s472, 1024, %s474, %s463, 64, 64, 4
        $region56: #{tpu_custom_call.1} parent=39 // pred_fallthru
          _
        // Predicated region
        $region57: #{tpu_custom_call.1} parent=39 // pred_check
          %p480 = pneg %p209
        $region58: #{tpu_custom_call.1} parent=39 // pred_check_branch
          %482 = sbr.rel (%p480) target = $region60
        $region59: #{tpu_custom_call.1} parent=39 // pred_region
          %p483 = scmp.lt.s32.totalorder %s22, 4
          %s484 = scalar_select %p483, %s22, 4
          %s485 = scalar_lea.vmem %s7, %s484
        $region60: #{tpu_custom_call.1} parent=39 // pred_fallthru
          _
        // Predicated region
        $region61: #{tpu_custom_call.1} parent=39 // pred_check
          %p486 = pneg %p235
        $region62: #{tpu_custom_call.1} parent=39 // pred_check_branch
          %488 = sbr.rel (%p486) target = $region64
        $region63: #{tpu_custom_call.1} parent=39 // pred_region
          %p489 = scmp.lt.s32.totalorder %s22, 4
          %s490 = scalar_select %p489, %s22, 4
          %s491 = scalar_lea.vmem %s8, %s490
        $region64: #{tpu_custom_call.1} parent=39 // pred_fallthru
          _
        // Predicated region
        $region65: #{tpu_custom_call.1} parent=39 // pred_check
          %p492 = pneg %p261
        $region66: #{tpu_custom_call.1} parent=39 // pred_check_branch
          %494 = sbr.rel (%p492) target = $region68
        $region67: #{tpu_custom_call.1} parent=39 // pred_region
          %p495 = scmp.lt.s32.totalorder %s22, 4
          %s496 = scalar_select %p495, %s22, 4
          %s497 = scalar_lea.vmem %s9, %s496
        $region68: #{tpu_custom_call.1} parent=39 // pred_fallthru
          _
      $region40: #{tpu_custom_call.1} parent=5 // pred_fallthru
        _
      %p498 = scmp.le.s32.totalorder 1, %s22
      %p499 = scmp.lt.s32.totalorder %s22, 6
      %p500 = pnand %p498, %p499
      %p501 = pneg %p500
      // Predicated region
      $region69: #{tpu_custom_call.1} parent=5 // pred_check
        _
      $region70: #{tpu_custom_call.1} parent=5 // pred_check_branch
        %503 = sbr.rel (%p500) target = $region72
      $region71: #{tpu_custom_call.1} parent=5 // pred_region
        %s504 = ssub.s32 %s22, 1
        // Predicated region
        $region73: #{tpu_custom_call.1} parent=71 // pred_check
          %p505 = pneg %p43
        $region74: #{tpu_custom_call.1} parent=71 // pred_check_branch
          %507 = sbr.rel (%p505) target = $region76
        $region75: #{tpu_custom_call.1} parent=71 // pred_region
          %508 = dma.done [#allocation4], 128
        $region76: #{tpu_custom_call.1} parent=71 // pred_fallthru
          _
        // Predicated region
        $region77: #{tpu_custom_call.1} parent=71 // pred_check
          %p509 = pneg %p64
        $region78: #{tpu_custom_call.1} parent=71 // pred_check_branch
          %511 = sbr.rel (%p509) target = $region80
        $region79: #{tpu_custom_call.1} parent=71 // pred_region
          %512 = dma.done [#allocation7], 64
        $region80: #{tpu_custom_call.1} parent=71 // pred_fallthru
          _
        %s513 = sand.u32 %s27, 1
        %s514 = scalar_lea.sflag [#allocation4], %s513
        %s515 = sand.u32 %s124, 1
        %s516 = smul.addr %s515, 64
        %s517 = scalar_lea.vmem [#allocation8], %s516
        // Predicated region
        $region81: #{tpu_custom_call.1} parent=71 // pred_check
          %p518 = pneg %p137
        $region82: #{tpu_custom_call.1} parent=71 // pred_check_branch
          %520 = sbr.rel (%p518) target = $region84
        $region83: #{tpu_custom_call.1} parent=71 // pred_region
          %521 = dma.done %s514, 1024
        $region84: #{tpu_custom_call.1} parent=71 // pred_fallthru
          _
        %s522 = sand.u32 %s27, 1
        %s523 = scalar_lea.sflag [#allocation4], %s522
        %s524 = sand.u32 %s150, 1
        %s525 = scalar_lea.vmem [#allocation9], %s524
        // Predicated region
        $region85: #{tpu_custom_call.1} parent=71 // pred_check
          %p526 = pneg %p163
        $region86: #{tpu_custom_call.1} parent=71 // pred_check_branch
          %528 = sbr.rel (%p526) target = $region88
        $region87: #{tpu_custom_call.1} parent=71 // pred_region
          %529 = dma.done %s523, 16
        $region88: #{tpu_custom_call.1} parent=71 // pred_fallthru
          _
        %s530 = sand.u32 %s27, 1
        %s531 = scalar_lea.sflag [#allocation4], %s530
        %s532 = sand.u32 %s176, 1
        %s533 = smul.addr %s532, 64
        %s534 = scalar_lea.vmem [#allocation10], %s533
        // Predicated region
        $region89: #{tpu_custom_call.1} parent=71 // pred_check
          %p535 = pneg %p189
        $region90: #{tpu_custom_call.1} parent=71 // pred_check_branch
          %537 = sbr.rel (%p535) target = $region92
        $region91: #{tpu_custom_call.1} parent=71 // pred_region
          %538 = dma.done %s531, 1024
        $region92: #{tpu_custom_call.1} parent=71 // pred_fallthru
          _
        // Predicated region
        $region93: #{tpu_custom_call.1} parent=71 // pred_check
          %p539 = pneg %p288
        $region94: #{tpu_custom_call.1} parent=71 // pred_check_branch
          %541 = sbr.rel (%p539) target = $region96
        $region95: #{tpu_custom_call.1} parent=71 // pred_region
          %542 = dma.done [#allocation7], 1024
        $region96: #{tpu_custom_call.1} parent=71 // pred_fallthru
          _
        %p543 = pneg %p43
        %p544 = pneg %p40
        %p545 = pneg %p64
        %p546 = pneg %p61
        %p547 = pneg %p85
        %p548 = pneg %p82
        %p549 = scmp.lt.s32.totalorder %s27, 4
        %s550 = scalar_select %p549, %s27, 4
        %s551 = smul.addr %s550, 4
        %s552 = scalar_lea.vmem %s3, %s551
        %p553 = pneg %p111
        %p554 = pneg %p108
        %s555 = sand.u32 %s27, 1
        %s556 = scalar_lea.sflag [#allocation4], %s555
        %s557 = sand.u32 %s124, 1
        %s558 = smul.addr %s557, 64
        %s559 = scalar_lea.vmem [#allocation8], %s558
        %p560 = pneg %p137
        %p561 = pneg %p134
        %s562 = sand.u32 %s27, 1
        %s563 = scalar_lea.sflag [#allocation4], %s562
        %s564 = sand.u32 %s150, 1
        %s565 = scalar_lea.vmem [#allocation9], %s564
        %p566 = pneg %p163
        %p567 = pneg %p160
        %s568 = sand.u32 %s27, 1
        %s569 = scalar_lea.sflag [#allocation4], %s568
        %s570 = sand.u32 %s176, 1
        %s571 = smul.addr %s570, 64
        %s572 = scalar_lea.vmem [#allocation10], %s571
        %p573 = pneg %p189
        %p574 = pneg %p186
        %p575 = scmp.lt.s32.totalorder %s27, 4
        %s576 = scalar_select %p575, %s27, 4
        %s577 = scalar_lea.vmem %s7, %s576
        %p578 = pneg %p215
        %p579 = pneg %p212
        %p580 = scmp.lt.s32.totalorder %s27, 4
        %s581 = scalar_select %p580, %s27, 4
        %s582 = scalar_lea.vmem %s8, %s581
        %p583 = pneg %p241
        %p584 = pneg %p238
        %p585 = scmp.lt.s32.totalorder %s27, 4
        %s586 = scalar_select %p585, %s27, 4
        %s587 = scalar_lea.vmem %s9, %s586
        %p588 = pneg %p267
        %p589 = pneg %p264
        %p590 = pneg %p288
        %p591 = pneg %p285
        %p592 = pneg %p309
        %p593 = pneg %p306
        %p594 = pneg %p330
        %p595 = pneg %p327
        %p596 = pneg %p351
        %p597 = pneg %p348
        %p598 = scmp.lt.s32.totalorder %s27, 4
        %s599 = scalar_select %p598, %s27, 4
        %s600 = smul.addr %s599, 4
        %s601 = scalar_lea.vmem %s3, %s600
        %p602 = scmp.lt.s32.totalorder %s27, 4
        %s603 = scalar_select %p602, %s27, 4
        %s604 = scalar_lea.vmem %s7, %s603
        %p605 = scmp.lt.s32.totalorder %s27, 4
        %s606 = scalar_select %p605, %s27, 4
        %s607 = scalar_lea.vmem %s8, %s606
        %p608 = scmp.lt.s32.totalorder %s27, 4
        %s609 = scalar_select %p608, %s27, 4
        %s610 = scalar_lea.vmem %s9, %s609
        %p612 = scmp.eq.s32.totalorder %s27, 0
        // Predicated region
        $region97: #{tpu_custom_call.1} parent=71 // pred_check
          %p613 = pneg %p612
        $region98: #{tpu_custom_call.1} parent=71 // pred_check_branch
          %615 = sbr.rel (%p613) target = $region100
        $region99: #{tpu_custom_call.1} parent=71 // pred_region
          %v616 = vld [vmem:[#allocation3] sm:$0xff]
          %617 = vst [vmem:[#allocation2] sm:$0xff] %v616
        $region100: #{tpu_custom_call.1} parent=71 // pred_fallthru
          _
        %v618 = vld [vmem:[#allocation6] sm:$0xf]
        %v619 = vld [vmem:[#allocation2] sm:$0xff]
        %v620 = vpack.c.bf16 %v619, %v619
        %v621 = vld [vmem:[%s601] sm:$0xf]
        %v622 = vunpack.c.l.bf16 %v621
        %vm623 = vcmask 64512
        %v625 = vsel %vm623, %v618, 0
        %vm627 = vcmask 1043456
        %v629 = vsel %vm627, %v620, 0
        %631 = vmatprep.subr.bf16.mxu0 0
        %632 = vmatpush1.bf16.msra.mxu0 %v629
        %633 = vmatprep.subr.bf16.mxu0 0
        %634 = vmatpush1.bf16.msra.mxu0 0
        %635 = vmatprep.subr.bf16.mxu0 0
        %636 = vmatpush1.bf16.msra.mxu0 0
        %637 = vmatprep.subr.bf16.mxu0 0
        %638 = vmatpush1.bf16.msra.mxu0 0
        %639 = vmatprep.subr.bf16.mxu0 0
        %640 = vmatpush1.bf16.msra.mxu0 0
        %641 = vmatprep.subr.bf16.mxu0 0
        %642 = vmatpush1.bf16.msra.mxu0 0
        %643 = vmatprep.subr.bf16.mxu0 0
        %644 = vmatpush1.bf16.msra.mxu0 0
        %645 = vmatprep.subr.bf16.mxu0 0
        %646 = vmatpush1.bf16.msra.mxu0 0
        %647 = vmatprep.subr.bf16.mxu0 0
        %648 = vmatpush1.bf16.msra.mxu0 0
        %649 = vmatprep.subr.bf16.mxu0 0
        %650 = vmatpush1.bf16.msra.mxu0 0
        %651 = vmatprep.subr.bf16.mxu0 0
        %652 = vmatpush1.bf16.msra.mxu0 0
        %653 = vmatprep.subr.bf16.mxu0 0
        %654 = vmatpush1.bf16.msra.mxu0 0
        %655 = vmatprep.subr.bf16.mxu0 0
        %656 = vmatpush1.bf16.msra.mxu0 0
        %657 = vmatprep.subr.bf16.mxu0 0
        %658 = vmatpush1.bf16.msra.mxu0 0
        %659 = vmatprep.subr.bf16.mxu0 0
        %660 = vmatpush1.bf16.msra.mxu0 0
        %661 = vmatprep.subr.bf16.mxu0 0
        %662 = vmatpush1.bf16.msra.mxu0 0
        %663 = vmatprep.mubr.bf16.mxu0 0
        %664 = vmatmul.mubr.bf16.gmra.mrb[0].mxu0 %v625
        %v665 = vpop.f32.mrb[0].mxu0
        %v666 = vadd.f32 %v622, %v665
        %v667 = vpop.f32.mrb[0].mxu0
        %v668 = vpop.f32.mrb[0].mxu0
        %v669 = vpop.f32.mrb[0].mxu0
        %670 = vdwg.mxu0
        %v671 = vpack.c.bf16 %v666, %v666
        %v672 = vld [vmem:[%s517] sm:$0xf]
        %v673 = vld [vmem:[%s517 + $0x4] sm:$0xf]
        %v674 = vld [vmem:[%s517 + $0x8] sm:$0xf]
        %v675 = vld [vmem:[%s517 + $0xc] sm:$0xf]
        %v676 = vld [vmem:[%s517 + $0x10] sm:$0xf]
        %v677 = vld [vmem:[%s517 + $0x14] sm:$0xf]
        %v678 = vld [vmem:[%s517 + $0x18] sm:$0xf]
        %v679 = vld [vmem:[%s517 + $0x1c] sm:$0xf]
        %v680 = vld [vmem:[%s517 + $0x20] sm:$0xf]
        %v681 = vld [vmem:[%s517 + $0x24] sm:$0xf]
        %v682 = vld [vmem:[%s517 + $0x28] sm:$0xf]
        %v683 = vld [vmem:[%s517 + $0x2c] sm:$0xf]
        %v684 = vld [vmem:[%s517 + $0x30] sm:$0xf]
        %v685 = vld [vmem:[%s517 + $0x34] sm:$0xf]
        %v686 = vld [vmem:[%s517 + $0x38] sm:$0xf]
        %v687 = vld [vmem:[%s517 + $0x3c] sm:$0xf]
        %v688 = vld [vmem:[%s525] sm:$0x1]
        %v690 = vlaneseq
        %v691 = vshrl.u32 %v690, 7
        %v692 = vsub.s32 0, %v691
        %v693 = vrot.slane %v688, %v692
        %v711 = vunpack.c.l.b16 %v672
        %v712 = vunpack.c.l.b16 %v673
        %v713 = vunpack.c.l.b16 %v674
        %v714 = vunpack.c.l.b16 %v675
        %v715 = vunpack.c.l.b16 %v676
        %v716 = vunpack.c.l.b16 %v677
        %v717 = vunpack.c.l.b16 %v678
        %v718 = vunpack.c.l.b16 %v679
        %v719 = vunpack.c.l.b16 %v680
        %v720 = vunpack.c.l.b16 %v681
        %v721 = vunpack.c.l.b16 %v682
        %v722 = vunpack.c.l.b16 %v683
        %v723 = vunpack.c.l.b16 %v684
        %v724 = vunpack.c.l.b16 %v685
        %v725 = vunpack.c.l.b16 %v686
        %v726 = vunpack.c.l.b16 %v687
        %v727 = vpack.c.b16 %v712, %v711
        %v728 = vpack.c.b16 %v714, %v713
        %v729 = vpack.c.b16 %v716, %v715
        %v730 = vpack.c.b16 %v718, %v717
        %v731 = vpack.c.b16 %v720, %v719
        %v732 = vpack.c.b16 %v722, %v721
        %v733 = vpack.c.b16 %v724, %v723
        %v734 = vpack.c.b16 %v726, %v725
        %743 = vmatprep.subr.bf16.mxu0 0
        %744 = vmatpush1.bf16.msra.mxu0 %v727
        %745 = vmatprep.subr.bf16.mxu0 0
        %746 = vmatpush1.bf16.msra.mxu0 %v728
        %747 = vmatprep.subr.bf16.mxu0 0
        %748 = vmatpush1.bf16.msra.mxu0 %v729
        %749 = vmatprep.subr.bf16.mxu0 0
        %750 = vmatpush1.bf16.msra.mxu0 %v730
        %751 = vmatprep.subr.bf16.mxu0 0
        %752 = vmatpush1.bf16.msra.mxu0 %v731
        %753 = vmatprep.subr.bf16.mxu0 0
        %754 = vmatpush1.bf16.msra.mxu0 %v732
        %755 = vmatprep.subr.bf16.mxu0 0
        %756 = vmatpush1.bf16.msra.mxu0 %v733
        %757 = vmatprep.subr.bf16.mxu0 0
        %758 = vmatpush1.bf16.msra.mxu0 %v734
        %759 = vmatprep.subr.bf16.mxu0 0
        %760 = vmatpush1.bf16.msra.mxu0 0
        %761 = vmatprep.subr.bf16.mxu0 0
        %762 = vmatpush1.bf16.msra.mxu0 0
        %763 = vmatprep.subr.bf16.mxu0 0
        %764 = vmatpush1.bf16.msra.mxu0 0
        %765 = vmatprep.subr.bf16.mxu0 0
        %766 = vmatpush1.bf16.msra.mxu0 0
        %767 = vmatprep.subr.bf16.mxu0 0
        %768 = vmatpush1.bf16.msra.mxu0 0
        %769 = vmatprep.subr.bf16.mxu0 0
        %770 = vmatpush1.bf16.msra.mxu0 0
        %771 = vmatprep.subr.bf16.mxu0 0
        %772 = vmatpush1.bf16.msra.mxu0 0
        %773 = vmatprep.subr.bf16.mxu0 0
        %774 = vmatpush1.bf16.msra.mxu0 0
        %775 = vmatprep.mubr.bf16.mxu0 0
        %776 = vmatmul.mubr.bf16.gmra.mrb[0].mxu0 %v671
        %v777 = vpop.f32.mrb[0].mxu0
        %v778 = vadd.f32 %v693, %v777
        %v779 = vpop.f32.mrb[0].mxu0
        %v780 = vpop.f32.mrb[0].mxu0
        %v781 = vpop.f32.mrb[0].mxu0
        %782 = vdwg.mxu0
        %v783 = vmax.f32 %v778, 0.0
        %v784 = vpack.c.bf16 %v783, %v783
        %v785 = vld [vmem:[%s534] sm:$0xf]
        %v786 = vld [vmem:[%s534 + $0x4] sm:$0xf]
        %v787 = vld [vmem:[%s534 + $0x8] sm:$0xf]
        %v788 = vld [vmem:[%s534 + $0xc] sm:$0xf]
        %v789 = vld [vmem:[%s534 + $0x10] sm:$0xf]
        %v790 = vld [vmem:[%s534 + $0x14] sm:$0xf]
        %v791 = vld [vmem:[%s534 + $0x18] sm:$0xf]
        %v792 = vld [vmem:[%s534 + $0x1c] sm:$0xf]
        %v793 = vld [vmem:[%s534 + $0x20] sm:$0xf]
        %v794 = vld [vmem:[%s534 + $0x24] sm:$0xf]
        %v795 = vld [vmem:[%s534 + $0x28] sm:$0xf]
        %v796 = vld [vmem:[%s534 + $0x2c] sm:$0xf]
        %v797 = vld [vmem:[%s534 + $0x30] sm:$0xf]
        %v798 = vld [vmem:[%s534 + $0x34] sm:$0xf]
        %v799 = vld [vmem:[%s534 + $0x38] sm:$0xf]
        %v800 = vld [vmem:[%s534 + $0x3c] sm:$0xf]
        %v801 = vld [vmem:[%s604] sm:$0x1]
        %v803 = vlaneseq
        %v804 = vshrl.u32 %v803, 7
        %v805 = vsub.s32 0, %v804
        %v806 = vrot.slane %v801, %v805
        %v824 = vunpack.c.l.b16 %v785
        %v825 = vunpack.c.l.b16 %v786
        %v826 = vunpack.c.l.b16 %v787
        %v827 = vunpack.c.l.b16 %v788
        %v828 = vunpack.c.l.b16 %v789
        %v829 = vunpack.c.l.b16 %v790
        %v830 = vunpack.c.l.b16 %v791
        %v831 = vunpack.c.l.b16 %v792
        %v832 = vunpack.c.l.b16 %v793
        %v833 = vunpack.c.l.b16 %v794
        %v834 = vunpack.c.l.b16 %v795
        %v835 = vunpack.c.l.b16 %v796
        %v836 = vunpack.c.l.b16 %v797
        %v837 = vunpack.c.l.b16 %v798
        %v838 = vunpack.c.l.b16 %v799
        %v839 = vunpack.c.l.b16 %v800
        %v840 = vpack.c.b16 %v825, %v824
        %v841 = vpack.c.b16 %v827, %v826
        %v842 = vpack.c.b16 %v829, %v828
        %v843 = vpack.c.b16 %v831, %v830
        %v844 = vpack.c.b16 %v833, %v832
        %v845 = vpack.c.b16 %v835, %v834
        %v846 = vpack.c.b16 %v837, %v836
        %v847 = vpack.c.b16 %v839, %v838
        %856 = vmatprep.subr.bf16.mxu0 0
        %857 = vmatpush1.bf16.msra.mxu0 %v840
        %858 = vmatprep.subr.bf16.mxu0 0
        %859 = vmatpush1.bf16.msra.mxu0 %v841
        %860 = vmatprep.subr.bf16.mxu0 0
        %861 = vmatpush1.bf16.msra.mxu0 %v842
        %862 = vmatprep.subr.bf16.mxu0 0
        %863 = vmatpush1.bf16.msra.mxu0 %v843
        %864 = vmatprep.subr.bf16.mxu0 0
        %865 = vmatpush1.bf16.msra.mxu0 %v844
        %866 = vmatprep.subr.bf16.mxu0 0
        %867 = vmatpush1.bf16.msra.mxu0 %v845
        %868 = vmatprep.subr.bf16.mxu0 0
        %869 = vmatpush1.bf16.msra.mxu0 %v846
        %870 = vmatprep.subr.bf16.mxu0 0
        %871 = vmatpush1.bf16.msra.mxu0 %v847
        %872 = vmatprep.subr.bf16.mxu0 0
        %873 = vmatpush1.bf16.msra.mxu0 0
        %874 = vmatprep.subr.bf16.mxu0 0
        %875 = vmatpush1.bf16.msra.mxu0 0
        %876 = vmatprep.subr.bf16.mxu0 0
        %877 = vmatpush1.bf16.msra.mxu0 0
        %878 = vmatprep.subr.bf16.mxu0 0
        %879 = vmatpush1.bf16.msra.mxu0 0
        %880 = vmatprep.subr.bf16.mxu0 0
        %881 = vmatpush1.bf16.msra.mxu0 0
        %882 = vmatprep.subr.bf16.mxu0 0
        %883 = vmatpush1.bf16.msra.mxu0 0
        %884 = vmatprep.subr.bf16.mxu0 0
        %885 = vmatpush1.bf16.msra.mxu0 0
        %886 = vmatprep.subr.bf16.mxu0 0
        %887 = vmatpush1.bf16.msra.mxu0 0
        %888 = vmatprep.mubr.bf16.mxu0 0
        %889 = vmatmul.mubr.bf16.gmra.mrb[0].mxu0 %v784
        %v890 = vpop.f32.mrb[0].mxu0
        %v891 = vadd.f32 %v806, %v890
        %v892 = vpop.f32.mrb[0].mxu0
        %v893 = vpop.f32.mrb[0].mxu0
        %v894 = vpop.f32.mrb[0].mxu0
        %895 = vdwg.mxu0
        %v896 = vld [vmem:[%s2] sm:$0xff]
        %898 = vset.pattern.permute.xlu0 0
        %899 = vperm.xlu0 %898, %v896
        %v900 = vpop.permute.xlu0 %899
        %v902 = vmul.f32 %v891, %v900
        %v903 = vrot.slane %v902, 4
        %v904 = vadd.f32 %v902, %v903
        %v905 = vrot.slane %v904, 2
        %v906 = vadd.f32 %v904, %v905
        %v907 = vrot.slane %v906, 1
        %v908 = vadd.f32 %v906, %v907
        %v909 = vmul.f32 %v908, 0.125
        %v910 = vmul.f32 %v902, %v902
        %v911 = vrot.slane %v910, 4
        %v912 = vadd.f32 %v910, %v911
        %v913 = vrot.slane %v912, 2
        %v914 = vadd.f32 %v912, %v913
        %v915 = vrot.slane %v914, 1
        %v916 = vadd.f32 %v914, %v915
        %v917 = vmul.f32 %v916, 0.125
        %v918 = vmul.f32 %v909, %v909
        %v919 = vsub.f32 %v917, %v918
        %v920 = vsub.f32 %v902, %v909
        %v921 = vadd.f32 %v919, 1e-05
        %v922 = vrsqrt.pop %v921
        %v923 = vmul.f32 %v920, %v922
        %v924 = vld [vmem:[%s607] sm:$0x1]
        %v926 = vlaneseq
        %v927 = vshrl.u32 %v926, 7
        %v928 = vsub.s32 0, %v927
        %v929 = vrot.slane %v924, %v928
        %v931 = vmul.f32 %v923, %v929
        %v932 = vld [vmem:[%s610] sm:$0x1]
        %v934 = vlaneseq
        %v935 = vshrl.u32 %v934, 7
        %v936 = vsub.s32 0, %v935
        %v937 = vrot.slane %v932, %v936
        %v939 = vadd.f32 %v931, %v937
        %p940 = scmp.eq.s32.totalorder %s27, 4
        %p941 = scmp.ne.s32.totalorder %s27, 4
        // Predicated region
        $region101: #{tpu_custom_call.1} parent=71 // pred_check
          %p942 = pneg %p941
        $region102: #{tpu_custom_call.1} parent=71 // pred_check_branch
          %944 = sbr.rel (%p942) target = $region104
        $region103: #{tpu_custom_call.1} parent=71 // pred_region
          %v945 = vmax.f32 %v939, 0.0
          %946 = vst [vmem:[#allocation2] sm:$0xff] %v945
        $region104: #{tpu_custom_call.1} parent=71 // pred_fallthru
          _
        // Predicated region
        $region105: #{tpu_custom_call.1} parent=71 // pred_check
          %p947 = pneg %p940
        $region106: #{tpu_custom_call.1} parent=71 // pred_check_branch
          %949 = sbr.rel (%p947) target = $region108
        $region107: #{tpu_custom_call.1} parent=71 // pred_region
          %v950 = vpack.c.bf16 %v939, %v939
          %v951 = vld [vmem:[#allocation11] sm:$0xf]
          %v952 = vld [vmem:[#allocation11 + $0x4] sm:$0xf]
          %v953 = vld [vmem:[#allocation11 + $0x8] sm:$0xf]
          %v954 = vld [vmem:[#allocation11 + $0xc] sm:$0xf]
          %v955 = vld [vmem:[#allocation11 + $0x10] sm:$0xf]
          %v956 = vld [vmem:[#allocation11 + $0x14] sm:$0xf]
          %v957 = vld [vmem:[#allocation11 + $0x18] sm:$0xf]
          %v958 = vld [vmem:[#allocation11 + $0x1c] sm:$0xf]
          %v959 = vld [vmem:[#allocation11 + $0x20] sm:$0xf]
          %v960 = vld [vmem:[#allocation11 + $0x24] sm:$0xf]
          %v961 = vld [vmem:[#allocation11 + $0x28] sm:$0xf]
          %v962 = vld [vmem:[#allocation11 + $0x2c] sm:$0xf]
          %v963 = vld [vmem:[#allocation11 + $0x30] sm:$0xf]
          %v964 = vld [vmem:[#allocation11 + $0x34] sm:$0xf]
          %v965 = vld [vmem:[#allocation11 + $0x38] sm:$0xf]
          %v966 = vld [vmem:[#allocation11 + $0x3c] sm:$0xf]
          %v967 = vld [vmem:[%s11] sm:$0x1]
          %v969 = vlaneseq
          %v970 = vshrl.u32 %v969, 7
          %v971 = vsub.s32 0, %v970
          %v972 = vrot.slane %v967, %v971
          %v990 = vunpack.c.l.b16 %v951
          %v991 = vunpack.c.l.b16 %v952
          %v992 = vunpack.c.l.b16 %v953
          %v993 = vunpack.c.l.b16 %v954
          %v994 = vunpack.c.l.b16 %v955
          %v995 = vunpack.c.l.b16 %v956
          %v996 = vunpack.c.l.b16 %v957
          %v997 = vunpack.c.l.b16 %v958
          %v998 = vunpack.c.l.b16 %v959
          %v999 = vunpack.c.l.b16 %v960
          %v1000 = vunpack.c.l.b16 %v961
          %v1001 = vunpack.c.l.b16 %v962
          %v1002 = vunpack.c.l.b16 %v963
          %v1003 = vunpack.c.l.b16 %v964
          %v1004 = vunpack.c.l.b16 %v965
          %v1005 = vunpack.c.l.b16 %v966
          %v1006 = vpack.c.b16 %v991, %v990
          %v1007 = vpack.c.b16 %v993, %v992
          %v1008 = vpack.c.b16 %v995, %v994
          %v1009 = vpack.c.b16 %v997, %v996
          %v1010 = vpack.c.b16 %v999, %v998
          %v1011 = vpack.c.b16 %v1001, %v1000
          %v1012 = vpack.c.b16 %v1003, %v1002
          %v1013 = vpack.c.b16 %v1005, %v1004
          %1022 = vmatprep.subr.bf16.mxu0 0
          %1023 = vmatpush1.bf16.msra.mxu0 %v1006
          %1024 = vmatprep.subr.bf16.mxu0 0
          %1025 = vmatpush1.bf16.msra.mxu0 %v1007
          %1026 = vmatprep.subr.bf16.mxu0 0
          %1027 = vmatpush1.bf16.msra.mxu0 %v1008
          %1028 = vmatprep.subr.bf16.mxu0 0
          %1029 = vmatpush1.bf16.msra.mxu0 %v1009
          %1030 = vmatprep.subr.bf16.mxu0 0
          %1031 = vmatpush1.bf16.msra.mxu0 %v1010
          %1032 = vmatprep.subr.bf16.mxu0 0
          %1033 = vmatpush1.bf16.msra.mxu0 %v1011
          %1034 = vmatprep.subr.bf16.mxu0 0
          %1035 = vmatpush1.bf16.msra.mxu0 %v1012
          %1036 = vmatprep.subr.bf16.mxu0 0
          %1037 = vmatpush1.bf16.msra.mxu0 %v1013
          %1038 = vmatprep.subr.bf16.mxu0 0
          %1039 = vmatpush1.bf16.msra.mxu0 0
          %1040 = vmatprep.subr.bf16.mxu0 0
          %1041 = vmatpush1.bf16.msra.mxu0 0
          %1042 = vmatprep.subr.bf16.mxu0 0
          %1043 = vmatpush1.bf16.msra.mxu0 0
          %1044 = vmatprep.subr.bf16.mxu0 0
          %1045 = vmatpush1.bf16.msra.mxu0 0
          %1046 = vmatprep.subr.bf16.mxu0 0
          %1047 = vmatpush1.bf16.msra.mxu0 0
          %1048 = vmatprep.subr.bf16.mxu0 0
          %1049 = vmatpush1.bf16.msra.mxu0 0
          %1050 = vmatprep.subr.bf16.mxu0 0
          %1051 = vmatpush1.bf16.msra.mxu0 0
          %1052 = vmatprep.subr.bf16.mxu0 0
          %1053 = vmatpush1.bf16.msra.mxu0 0
          %1054 = vmatprep.mubr.bf16.mxu0 0
          %1055 = vmatmul.mubr.bf16.gmra.mrb[0].mxu0 %v950
          %v1056 = vpop.f32.mrb[0].mxu0
          %v1057 = vadd.f32 %v972, %v1056
          %v1058 = vpop.f32.mrb[0].mxu0
          %v1059 = vpop.f32.mrb[0].mxu0
          %v1060 = vpop.f32.mrb[0].mxu0
          %1061 = vdwg.mxu0
          %v1062 = vld [vmem:[%s12] sm:$0xff]
          %v1064 = vsel %vm623, %v1062, 0
          %1066 = vmatprep.subr.mxu0 0.0
          %1067 = vmatpush1.msra.mxu0 %v1057
          %1068 = vmatprep.subr.mxu0 0.0
          %1069 = vmatpush1.msra.mxu0 0.0
          %1070 = vmatprep.subr.mxu0 0.0
          %1071 = vmatpush1.msra.mxu0 0.0
          %1072 = vmatprep.subr.mxu0 0.0
          %1073 = vmatpush1.msra.mxu0 0.0
          %1074 = vmatprep.subr.mxu0 0.0
          %1075 = vmatpush1.msra.mxu0 0.0
          %1076 = vmatprep.subr.mxu0 0.0
          %1077 = vmatpush1.msra.mxu0 0.0
          %1078 = vmatprep.subr.mxu0 0.0
          %1079 = vmatpush1.msra.mxu0 0.0
          %1080 = vmatprep.subr.mxu0 0.0
          %1081 = vmatpush1.msra.mxu0 0.0
          %1082 = vmatprep.subr.mxu0 0.0
          %1083 = vmatpush1.msra.mxu0 0.0
          %1084 = vmatprep.subr.mxu0 0.0
          %1085 = vmatpush1.msra.mxu0 0.0
          %1086 = vmatprep.subr.mxu0 0.0
          %1087 = vmatpush1.msra.mxu0 0.0
          %1088 = vmatprep.subr.mxu0 0.0
          %1089 = vmatpush1.msra.mxu0 0.0
          %1090 = vmatprep.subr.mxu0 0.0
          %1091 = vmatpush1.msra.mxu0 0.0
          %1092 = vmatprep.subr.mxu0 0.0
          %1093 = vmatpush1.msra.mxu0 0.0
          %1094 = vmatprep.subr.mxu0 0.0
          %1095 = vmatpush1.msra.mxu0 0.0
          %1096 = vmatprep.subr.mxu0 0.0
          %1097 = vmatpush1.msra.mxu0 0.0
          %1098 = vmatprep.subr.mxu0 0.0
          %1099 = vmatpush1.msra.mxu0 0.0
          %1100 = vmatprep.subr.mxu0 0.0
          %1101 = vmatpush1.msra.mxu0 0.0
          %1102 = vmatprep.subr.mxu0 0.0
          %1103 = vmatpush1.msra.mxu0 0.0
          %1104 = vmatprep.subr.mxu0 0.0
          %1105 = vmatpush1.msra.mxu0 0.0
          %1106 = vmatprep.subr.mxu0 0.0
          %1107 = vmatpush1.msra.mxu0 0.0
          %1108 = vmatprep.subr.mxu0 0.0
          %1109 = vmatpush1.msra.mxu0 0.0
          %1110 = vmatprep.subr.mxu0 0.0
          %1111 = vmatpush1.msra.mxu0 0.0
          %1112 = vmatprep.subr.mxu0 0.0
          %1113 = vmatpush1.msra.mxu0 0.0
          %1114 = vmatprep.subr.mxu0 0.0
          %1115 = vmatpush1.msra.mxu0 0.0
          %1116 = vmatprep.subr.mxu0 0.0
          %1117 = vmatpush1.msra.mxu0 0.0
          %1118 = vmatprep.subr.mxu0 0.0
          %1119 = vmatpush1.msra.mxu0 0.0
          %1120 = vmatprep.subr.mxu0 0.0
          %1121 = vmatpush1.msra.mxu0 0.0
          %1122 = vmatprep.subr.mxu0 0.0
          %1123 = vmatpush1.msra.mxu0 0.0
          %1124 = vmatprep.subr.mxu0 0.0
          %1125 = vmatpush1.msra.mxu0 0.0
          %1126 = vmatprep.subr.mxu0 0.0
          %1127 = vmatpush1.msra.mxu0 0.0
          %1128 = vmatprep.subr.mxu0 0.0
          %1129 = vmatpush1.msra.mxu0 0.0
          %1130 = vmatprep.mubr.f32.mxu0 0.0
          %1131 = vmatmul.mubr.f32.gmra.mrb[0].mxu0 %v1064
          %v1132 = vpop.f32.mrb[0].mxu0
          %v1133 = vadd.f32 0.0, %v1132
          %v1134 = vpop.f32.mrb[0].mxu0
          %1135 = vdwg.mxu0
          %1136 = vst [vmem:[#allocation12] sm:$0xff] %v1133
        $region108: #{tpu_custom_call.1} parent=71 // pred_fallthru
          _
        // Predicated region
        $region109: #{tpu_custom_call.1} parent=71 // pred_check
          %p1137 = pneg %p348
        $region110: #{tpu_custom_call.1} parent=71 // pred_check_branch
          %1139 = sbr.rel (%p1137) target = $region112
        $region111: #{tpu_custom_call.1} parent=71 // pred_region
          %s1141 = ssub.s32 128, 128
          %1142 = vsyncadd [#allocation5], %s1141
          %s1144 = sshll.u32 [#allocation12], 4
          %s1145 = int_to_ptr.vmem [resolvable:$true] %s1144
          %1147 = dma.vmem_to_hbm [thread:$0]  %s1145, 128, %s13, [#allocation5]
        $region112: #{tpu_custom_call.1} parent=71 // pred_fallthru
          _
        // Predicated region
        $region113: #{tpu_custom_call.1} parent=71 // pred_check
          %p1148 = pneg %p348
        $region114: #{tpu_custom_call.1} parent=71 // pred_check_branch
          %1150 = sbr.rel (%p1148) target = $region116
        $region115: #{tpu_custom_call.1} parent=71 // pred_region
          %1151 = dma.done [#allocation5], 128
        $region116: #{tpu_custom_call.1} parent=71 // pred_fallthru
          _
      $region72: #{tpu_custom_call.1} parent=5 // pred_fallthru
        _
      %p1152 = scmp.le.s32.totalorder 2, %s22
      // Predicated region
      $region117: #{tpu_custom_call.1} parent=5 // pred_check
        %p1153 = pneg %p1152
      $region118: #{tpu_custom_call.1} parent=5 // pred_check_branch
        %1155 = sbr.rel (%p1153) target = $region120
      $region119: #{tpu_custom_call.1} parent=5 // pred_region
        %s1156 = ssub.s32 %s22, 2
      $region120: #{tpu_custom_call.1} parent=5 // pred_fallthru
        _
    $region6: #{tpu_custom_call.1} parent=1 // loop_footer
      %s26 = sadd.s32 1, %s22
    $region7: #{tpu_custom_call.1} parent=1 // loop_footer_branch
      %21 = sbr.rel target = $region3
    $region8: #{tpu_custom_call.1} parent=1 // loop_exit
      _
    %1157 = vsyncpa [#allocation4], 1
    %s1158 = scalar_lea.sflag [#allocation4], 1
    %1159 = vsyncpa %s1158, 1
    %1160 = vsyncpa [#allocation7], 1
    %1161 = vsyncpa [#allocation5], 1
    %s1162 = scalar_lea.sflag [#allocation5], 1
    %1163 = vsyncpa %s1162, 1

</llo_original>
